<compile_context>
chip_gen: v7x
topology: tpu7x:2x2x1
jax: 0.10.0
libtpu: 0.0.40
codegen_flags: <defaults>
</compile_context>

<pallas_src>
import functools
import math

import jax
import jax.numpy as jnp
from jax.experimental import pallas as pl
from jax.experimental.pallas import tpu as pltpu

LANE = 128  # pad feature dims to the 128-lane vreg width (lane-dense stores)


def _round_up(v, m):
    return (v + m - 1) // m * m


def _pad2d(a, rows, cols):
    return jnp.pad(a, ((0, rows - a.shape[0]), (0, cols - a.shape[1])))


def _vmem_limit_bytes():
    """~7/8 of physical VMEM (96-112 MiB on v5e/v6e, ~56 MiB on v7x)."""
    try:
        cap = int(pltpu.get_tpu_info().vmem_capacity_bytes)
    except Exception:
        cap = 64 * 1024 * 1024
    return max(32 * 1024 * 1024, min(cap * 7 // 8, 112 * 1024 * 1024))


def quantize_adj(adj):
    """Per-row symmetric int8 quantization of the (row-normalized) adjacency."""
    row_max = jnp.max(jnp.abs(adj), axis=1, keepdims=True)
    scale = jnp.where(row_max > 0, row_max / 127.0, 1.0).astype(jnp.float32)
    adj_q = jnp.round(adj / scale).astype(jnp.int8)
    return adj_q, scale


# ----------------------------------------------------------------------------
# Fused GCNDeep stack kernel
#   grid = (layer, row-tile, K-tile)
#   adj streams as int8 tiles; support = h @ W[l] is computed JIT per K tile
#   during the i==0 pass; h and support live in VMEM across the whole grid.
# ----------------------------------------------------------------------------
def _gcn_stack_kernel(adj_ref, scale_ref, x_ref, w_ref, b_ref, out_ref,
                      h_ref, sup_ref, acc_ref, *, n_valid):
    l = pl.program_id(0)
    i = pl.program_id(1)
    k = pl.program_id(2)
    n_layers = pl.num_programs(0)
    nk = pl.num_programs(2)

    tm = acc_ref.shape[0]
    tk = adj_ref.shape[1]
    k_off = pl.multiple_of(k * tk, tk)

    # --- JIT support computation: during the first row-tile pass of a layer,
    #     produce the support rows for this K tile (overlaps the adj DMA; no
    #     layer-boundary stall).  Layer 0 reads x, later layers read h.
    @pl.when((i == 0) & (l == 0))
    def _():
        sup_ref[pl.ds(k_off, tk), :] = jnp.dot(
            x_ref[...], w_ref[0],
            preferred_element_type=jnp.float32).astype(sup_ref.dtype)

    @pl.when((i == 0) & (l > 0))
    def _():
        sup_ref[pl.ds(k_off, tk), :] = jnp.dot(
            h_ref[pl.ds(k_off, tk), :], w_ref[0],
            preferred_element_type=jnp.float32).astype(sup_ref.dtype)

    # --- K accumulation over adjacency column tiles (MXU inner loop).
    @pl.when(k == 0)
    def _():
        acc_ref[...] = jnp.zeros_like(acc_ref)

    acc_ref[...] += jnp.dot(
        adj_ref[...].astype(jnp.bfloat16),            # int8 -> bf16 (exact)
        sup_ref[pl.ds(k_off, tk), :],
        preferred_element_type=jnp.float32)

    # --- Epilogue: per-row dequant scale + bias, ReLU (all but last layer),
    #     zero padded rows, write back into resident h and the output.
    @pl.when(k == nk - 1)
    def _():
        out = acc_ref[...] * scale_ref[...] + b_ref[0]       # f32
        is_last = l == n_layers - 1
        out = jnp.where((out > 0.0) | is_last, out, 0.0)     # ReLU unless last
        rows = jax.lax.broadcasted_iota(jnp.int32, out.shape, 0) + i * tm
        out = jnp.where(rows < n_valid, out, 0.0)            # mask padded rows
        row_off = pl.multiple_of(i * tm, tm)
        h_ref[pl.ds(row_off, tm), :] = out.astype(h_ref.dtype)
        out_ref[...] = out.astype(out_ref.dtype)


def gcn_stack(adj_q_p, scale_p, x_p, w_stack, b_stack, *, n_valid,
              tile_m=256, tile_k=512):
    """Runs the whole GCN layer stack in one pallas_call; returns (N_p, fp) bf16."""
    n_layers = w_stack.shape[0]
    n_p = adj_q_p.shape[0]
    fp = w_stack.shape[-1]
    assert n_p % tile_m == 0 and n_p % tile_k == 0

    kernel = functools.partial(_gcn_stack_kernel, n_valid=n_valid)

    return pl.pallas_call(
        kernel,
        out_shape=jax.ShapeDtypeStruct((n_p, fp), jnp.bfloat16),
        grid_spec=pltpu.PrefetchScalarGridSpec(
            num_scalar_prefetch=0,
            grid=(n_layers, n_p // tile_m, n_p // tile_k),
            in_specs=[
                # adjacency: int8 (tm, tk) tiles, the only per-step HBM stream
                pl.BlockSpec((tile_m, tile_k), lambda l, i, k: (i, k)),
                # per-row dequantization scale for the current row tile
                pl.BlockSpec((tile_m, 1), lambda l, i, k: (i, 0)),
                # x: only fetched during the (l==0, i==0) pass; index frozen
                # afterwards so Pallas issues no further DMAs for it.
                pl.BlockSpec(
                    (tile_k, fp),
                    lambda l, i, k: (jnp.where((l == 0) & (i == 0), k, 0), 0)),
                # W[l], b[l]
                pl.BlockSpec((1, fp, fp), lambda l, i, k: (l, 0, 0)),
                pl.BlockSpec((1, 1, fp), lambda l, i, k: (l, 0, 0)),
            ],
            # Final-layer activations only; revisited across layers, last
            # (final-layer) write wins in sequential grid order.
            out_specs=pl.BlockSpec((tile_m, fp), lambda l, i, k: (i, 0)),
            scratch_shapes=[
                pltpu.VMEM((n_p, fp), jnp.bfloat16),    # resident hidden state
                pltpu.VMEM((n_p, fp), jnp.bfloat16),    # per-layer support
                pltpu.VMEM((tile_m, fp), jnp.float32),  # K accumulator
            ],
        ),
        compiler_params=pltpu.CompilerParams(
            # h/support scratch carry state across layers and row tiles, so
            # the fused grid must stay serial (safe no-op on 1-TC chips).
            dimension_semantics=("arbitrary", "arbitrary", "arbitrary"),
            vmem_limit_bytes=_vmem_limit_bytes(),
        ),
    )(adj_q_p, scale_p, x_p, w_stack, b_stack)


# ----------------------------------------------------------------------------
# Tiled dists = E @ E.T with zeroed diagonal (E fully resident, fetched once)
# ----------------------------------------------------------------------------
def _dists_kernel(ei_ref, ej_ref, out_ref):
    tile = out_ref.shape[1]
    j_off = pl.multiple_of(pl.program_id(1) * tile, tile)
    # A @ B^T via dot_general contracting the last axes (no transpose copy).
    d = jax.lax.dot_general(
        ei_ref[...], ej_ref[pl.ds(j_off, tile), :],
        dimension_numbers=(((1,), (1,)), ((), ())),
        preferred_element_type=jnp.float32)
    out_ref[...] = d

    # Zero the diagonal only on diagonal tiles (square aligned tiles, so the
    # global diagonal is exactly the local diagonal when i == j).
    @pl.when(pl.program_id(0) == pl.program_id(1))
    def _():
        row = jax.lax.broadcasted_iota(jnp.int32, d.shape, 0)
        col = jax.lax.broadcasted_iota(jnp.int32, d.shape, 1)
        out_ref[...] = jnp.where(row == col, jnp.float32(0.0), d)


def pairwise_dists(e_p, *, tile=256):
    n_p, fp = e_p.shape
    assert n_p % tile == 0
    return pl.pallas_call(
        _dists_kernel,
        out_shape=jax.ShapeDtypeStruct((n_p, n_p), jnp.float32),
        grid_spec=pltpu.PrefetchScalarGridSpec(
            num_scalar_prefetch=0,
            grid=(n_p // tile, n_p // tile),
            in_specs=[
                pl.BlockSpec((tile, fp), lambda i, j: (i, 0)),  # E_i tile
                pl.BlockSpec((n_p, fp), lambda i, j: (0, 0)),   # E resident
            ],
            out_specs=pl.BlockSpec((tile, tile), lambda i, j: (i, j)),
        ),
        compiler_params=pltpu.CompilerParams(
            dimension_semantics=("parallel", "parallel"),
            vmem_limit_bytes=_vmem_limit_bytes(),
        ),
    )(e_p, e_p)


# ----------------------------------------------------------------------------
# Model
# ----------------------------------------------------------------------------
def init_params(key, nfeat, nhid, nout, nlayers):
    """Mimics GraphConvolution's uniform(-stdv, stdv) init."""
    dims = [nfeat] + [nhid] * (nlayers - 1) + [nout]
    params = []
    for i in range(nlayers):
        f_in, f_out = dims[i], dims[i + 1]
        key, kw, kb = jax.random.split(key, 3)
        stdv = 1.0 / jnp.sqrt(jnp.float32(f_out))
        w = jax.random.uniform(kw, (f_in, f_out), jnp.float32, -stdv, stdv)
        b = jax.random.uniform(kb, (f_out,), jnp.float32, -stdv, stdv)
        params.append((w, b))
    key, kd = jax.random.split(key)
    distmult = jax.random.uniform(kd, (dims[-1],), jnp.float32)  # unused in fwd
    return params, distmult


def gcnlp_forward(x, adj, params, *, tile_m=256, tile_k=512, dists_tile=256):
    """GCNDeep -> embeddings -> zero-diag pairwise dot-product matrix."""
    n, _ = x.shape
    nout = params[-1][0].shape[1]

    dims_all = [x.shape[1]]
    for w, _ in params:
        dims_all += [w.shape[0], w.shape[1]]
    fp = _round_up(max(dims_all), LANE)                  # lane-dense feature dim
    n_p = _round_up(n, math.lcm(tile_m, tile_k, dists_tile))

    # Per-row int8 quantization of the adjacency (the dominant HBM stream).
    adj_q, adj_scale = quantize_adj(adj)

    # Zero-padding keeps real rows/cols exact: padded adj rows/cols are zero,
    # padded rows are additionally masked to zero in the kernel epilogue.
    x_p = _pad2d(x, n_p, fp).astype(jnp.bfloat16)
    adj_q_p = _pad2d(adj_q, n_p, n_p)                    # int8
    scale_p = jnp.pad(adj_scale, ((0, n_p - n), (0, 0)))  # (n_p, 1) f32
    w_stack = jnp.stack([_pad2d(w, fp, fp) for w, _ in params]).astype(jnp.bfloat16)
    b_stack = jnp.stack(
        [jnp.pad(b, (0, fp - b.shape[0])).reshape(1, fp) for _, b in params]
    ).astype(jnp.float32)

    embeds_p = gcn_stack(adj_q_p, scale_p, x_p, w_stack, b_stack,
                         n_valid=n, tile_m=tile_m, tile_k=tile_k)  # (n_p, fp) bf16
    dists_p = pairwise_dists(embeds_p, tile=dists_tile)

    embeds = embeds_p[:n, :nout].astype(jnp.float32)
    dists = dists_p[:n, :n]
    # F.dropout(..., training=False) is identity; omitted (eval mode).
    # TODO(synk): lp_layer(dists, K) (CvxpyLayer k-center LP) has no Pallas
    # equivalent; returning embeds and the LP's parameter matrix instead.
    return embeds, dists


def gcnlp_reference(x, adj, params):
    """Pure-JAX reference mirroring the kernel math (int8 adj + bf16 matmuls,
    f32 accumulation, per-row dequant scale applied after accumulation)."""
    adj_q, scale = quantize_adj(adj)
    adj_b = adj_q.astype(jnp.bfloat16)                   # int8 -> bf16 (exact)
    h = x.astype(jnp.bfloat16)
    n_layers = len(params)
    out = None
    for li, (w, b) in enumerate(params):
        sup = jnp.dot(h, w.astype(jnp.bfloat16),
                      preferred_element_type=jnp.float32).astype(jnp.bfloat16)
        out = jnp.dot(adj_b, sup, preferred_element_type=jnp.float32) * scale + b
        if li != n_layers - 1:
            h = jnp.maximum(out, 0.0).astype(jnp.bfloat16)
    embeds = out
    e_bf = embeds.astype(jnp.bfloat16)
    d = jnp.dot(e_bf, e_bf.T, preferred_element_type=jnp.float32)
    d = d * (1.0 - jnp.eye(d.shape[0], dtype=jnp.float32))
    return embeds, d


def build_normalized_adj(key, n):
    """Symmetric, self-looped, row-normalized dense adjacency."""
    a = (jax.random.uniform(key, (n, n)) > 0.7).astype(jnp.float32)
    a = jnp.maximum(a, a.T)
    a = a + jnp.eye(n, dtype=jnp.float32)
    deg = jnp.sum(a, axis=1, keepdims=True)
    return a / deg


# ----------------------------------------------------------------------------
# Driver
# ----------------------------------------------------------------------------
if __name__ == "__main__":
    N = 300       # num_nodes (padded to 512 -> 2x2 adj tile grid with 256 tiles)
    NFEAT = 8
    NHID = 32
    NOUT = 16
    NLAYERS = 3
    K = 2         # only used by the (untranslated) LP layer

    key = jax.random.PRNGKey(0)
    key, kx, ka, kp = jax.random.split(key, 4)

    x = jax.random.normal(kx, (N, NFEAT), jnp.float32)
    adj = build_normalized_adj(ka, N)
    params, distmult = init_params(kp, NFEAT, NHID, NOUT, NLAYERS)

    # Small-N smoke test: 256x256 tiles so the K-accumulation / multi-row-tile
    # paths are exercised.  Production defaults are tile_m=256, tile_k=512.
    embeds, dists = gcnlp_forward(x, adj, params, tile_m=256, tile_k=256)
    embeds = jax.block_until_ready(embeds)
    dists = jax.block_until_ready(dists)

    # Correctness checks vs. a pure-JAX reference using the same quantized adj.
    ref_embeds, ref_dists = gcnlp_reference(x, adj, params)

    assert embeds.shape == (N, NOUT)
    assert dists.shape == (N, N)
    assert float(jnp.max(jnp.abs(jnp.diag(dists)))) == 0.0
    assert bool(jnp.all(jnp.isfinite(embeds)))
    assert bool(jnp.all(jnp.isfinite(dists)))
    assert jnp.allclose(embeds, ref_embeds, rtol=2e-2, atol=2e-2), (
        float(jnp.max(jnp.abs(embeds - ref_embeds))))
    assert jnp.allclose(dists, ref_dists, rtol=2e-2, atol=2e-2), (
        float(jnp.max(jnp.abs(dists - ref_dists))))

    print("KERNEL_OK")
</pallas_src>

<mosaic_0001>
module attributes {stable_mosaic.version = 11 : i64} {
  func.func @_gcn_stack_kernel(%arg0: i32, %arg1: i32, %arg2: i32, %arg3: memref<256x256xi8, #tpu.memory_space<vmem>>, %arg4: memref<256x1xf32, #tpu.memory_space<vmem>>, %arg5: memref<256x128xbf16, #tpu.memory_space<vmem>>, %arg6: memref<1x128x128xbf16, #tpu.memory_space<vmem>>, %arg7: memref<1x1x128xf32, #tpu.memory_space<vmem>>, %arg8: memref<256x128xbf16, #tpu.memory_space<vmem>>, %arg9: memref<512x128xbf16, #tpu.memory_space<vmem>>, %arg10: memref<512x128xbf16, #tpu.memory_space<vmem>>, %arg11: memref<256x128xf32, #tpu.memory_space<vmem>>) attributes {dimension_semantics = [#tpu.dimension_semantics<arbitrary>, #tpu.dimension_semantics<arbitrary>, #tpu.dimension_semantics<arbitrary>], iteration_bounds = array<i64: 3, 2, 2>, scalar_prefetch = 0 : i64, scratch_operands = 3 : i64, tpu.core_type = #tpu.core_type<tc>, window_params = [{transform_indices = @transform_0, window_bounds = array<i64: 256, 256>}, {transform_indices = @transform_1, window_bounds = array<i64: 256, 1>}, {transform_indices = @transform_2, window_bounds = array<i64: 256, 128>}, {transform_indices = @transform_3, window_bounds = array<i64: 1, 128, 128>}, {transform_indices = @transform_4, window_bounds = array<i64: 1, 1, 128>}, {transform_indices = @transform_5, window_bounds = array<i64: 256, 128>}]} {
    %c256_i32 = arith.constant 256 : i32
    %0 = arith.muli %arg2, %c256_i32 : i32
    %1 = tpu.assume_multiple %0, 256 : i32
    %c0_i32 = arith.constant 0 : i32
    %2 = arith.cmpi eq, %arg1, %c0_i32 : i32
    %c0_i32_0 = arith.constant 0 : i32
    %3 = arith.cmpi eq, %arg0, %c0_i32_0 : i32
    %4 = arith.andi %2, %3 : i1
    %5 = arith.extui %4 : i1 to i32
    %c0_i32_1 = arith.constant 0 : i32
    %6 = arith.cmpi ne, %5, %c0_i32_1 : i32
    scf.if %6 {
      %c0_14 = arith.constant 0 : index
      %c0_15 = arith.constant 0 : index
      %26 = vector.load %arg5[%c0_14, %c0_15] : memref<256x128xbf16, #tpu.memory_space<vmem>>, vector<256x128xbf16>
      %c0_16 = arith.constant 0 : index
      %c0_17 = arith.constant 0 : index
      %c0_18 = arith.constant 0 : index
      %27 = vector.load %arg6[%c0_16, %c0_17, %c0_18] : memref<1x128x128xbf16, #tpu.memory_space<vmem>>, vector<1x128x128xbf16>
      %28 = vector.shape_cast %27 : vector<1x128x128xbf16> to vector<128x128xbf16>
      %cst_19 = arith.constant dense<0.000000e+00> : vector<256x128xf32>
      %29 = tpu.matmul %26, %28, %cst_19 {dimension_numbers = #tpu.dot_dimension_numbers<[1], [0], [0], [1], [0, 0, 1, 1], [], []>} : vector<256x128xbf16>, vector<128x128xbf16>, vector<256x128xf32> -> vector<256x128xf32>
      %30 = arith.truncf %29 : vector<256x128xf32> to vector<256x128xbf16>
      %31 = arith.index_cast %1 : i32 to index
      %c0_20 = arith.constant 0 : index
      %32 = vector.load %arg10[%31, %c0_20] : memref<512x128xbf16, #tpu.memory_space<vmem>>, vector<256x128xbf16>
      tpu.vector_store %arg10[%31, %c0_20], %30 {strides = array<i32>} : memref<512x128xbf16, #tpu.memory_space<vmem>>, vector<256x128xbf16>,
    } else {
    }
    %c0_i32_2 = arith.constant 0 : i32
    %7 = arith.cmpi eq, %arg1, %c0_i32_2 : i32
    %c0_i32_3 = arith.constant 0 : i32
    %8 = arith.cmpi sgt, %arg0, %c0_i32_3 : i32
    %9 = arith.andi %7, %8 : i1
    %10 = arith.extui %9 : i1 to i32
    %c0_i32_4 = arith.constant 0 : i32
    %11 = arith.cmpi ne, %10, %c0_i32_4 : i32
    scf.if %11 {
      %26 = arith.index_cast %1 : i32 to index
      %c0_14 = arith.constant 0 : index
      %27 = vector.load %arg9[%26, %c0_14] : memref<512x128xbf16, #tpu.memory_space<vmem>>, vector<256x128xbf16>
      %c0_15 = arith.constant 0 : index
      %c0_16 = arith.constant 0 : index
      %c0_17 = arith.constant 0 : index
      %28 = vector.load %arg6[%c0_15, %c0_16, %c0_17] : memref<1x128x128xbf16, #tpu.memory_space<vmem>>, vector<1x128x128xbf16>
      %29 = vector.shape_cast %28 : vector<1x128x128xbf16> to vector<128x128xbf16>
      %cst_18 = arith.constant dense<0.000000e+00> : vector<256x128xf32>
      %30 = tpu.matmul %27, %29, %cst_18 {dimension_numbers = #tpu.dot_dimension_numbers<[1], [0], [0], [1], [0, 0, 1, 1], [], []>} : vector<256x128xbf16>, vector<128x128xbf16>, vector<256x128xf32> -> vector<256x128xf32>
      %31 = arith.truncf %30 : vector<256x128xf32> to vector<256x128xbf16>
      %32 = arith.index_cast %1 : i32 to index
      %c0_19 = arith.constant 0 : index
      %33 = vector.load %arg10[%32, %c0_19] : memref<512x128xbf16, #tpu.memory_space<vmem>>, vector<256x128xbf16>
      tpu.vector_store %arg10[%32, %c0_19], %31 {strides = array<i32>} : memref<512x128xbf16, #tpu.memory_space<vmem>>, vector<256x128xbf16>,
    } else {
    }
    %c0_i32_5 = arith.constant 0 : i32
    %12 = arith.cmpi eq, %arg2, %c0_i32_5 : i32
    %13 = arith.extui %12 : i1 to i32
    %c0_i32_6 = arith.constant 0 : i32
    %14 = arith.cmpi ne, %13, %c0_i32_6 : i32
    scf.if %14 {
      %cst_14 = arith.constant 0.000000e+00 : f32
      %26 = vector.broadcast %cst_14 : f32 to vector<256x128xf32>
      %c0_15 = arith.constant 0 : index
      %c0_16 = arith.constant 0 : index
      %27 = vector.load %arg11[%c0_15, %c0_16] : memref<256x128xf32, #tpu.memory_space<vmem>>, vector<256x128xf32>
      tpu.vector_store %arg11[%c0_15, %c0_16], %26 {strides = array<i32>} : memref<256x128xf32, #tpu.memory_space<vmem>>, vector<256x128xf32>,
    } else {
    }
    %c0 = arith.constant 0 : index
    %c0_7 = arith.constant 0 : index
    %15 = vector.load %arg11[%c0, %c0_7] : memref<256x128xf32, #tpu.memory_space<vmem>>, vector<256x128xf32>
    %c0_8 = arith.constant 0 : index
    %c0_9 = arith.constant 0 : index
    %16 = vector.load %arg3[%c0_8, %c0_9] : memref<256x256xi8, #tpu.memory_space<vmem>>, vector<256x256xi8>
    %17 = arith.sitofp %16 : vector<256x256xi8> to vector<256x256xbf16>
    %18 = arith.index_cast %1 : i32 to index
    %c0_10 = arith.constant 0 : index
    %19 = vector.load %arg10[%18, %c0_10] : memref<512x128xbf16, #tpu.memory_space<vmem>>, vector<256x128xbf16>
    %cst = arith.constant dense<0.000000e+00> : vector<256x128xf32>
    %20 = tpu.matmul %17, %19, %cst {dimension_numbers = #tpu.dot_dimension_numbers<[1], [0], [0], [1], [0, 0, 1, 1], [], []>} : vector<256x256xbf16>, vector<256x128xbf16>, vector<256x128xf32> -> vector<256x128xf32>
    %21 = arith.addf %15, %20 : vector<256x128xf32>
    %c0_11 = arith.constant 0 : index
    %c0_12 = arith.constant 0 : index
    %22 = vector.load %arg11[%c0_11, %c0_12] : memref<256x128xf32, #tpu.memory_space<vmem>>, vector<256x128xf32>
    tpu.vector_store %arg11[%c0_11, %c0_12], %21 {strides = array<i32>} : memref<256x128xf32, #tpu.memory_space<vmem>>, vector<256x128xf32>,
    %c1_i32 = arith.constant 1 : i32
    %23 = arith.cmpi eq, %arg2, %c1_i32 : i32
    %24 = arith.extui %23 : i1 to i32
    %c0_i32_13 = arith.constant 0 : i32
    %25 = arith.cmpi ne, %24, %c0_i32_13 : i32
    scf.if %25 {
      %c0_14 = arith.constant 0 : index
      %c0_15 = arith.constant 0 : index
      %26 = vector.load %arg11[%c0_14, %c0_15] : memref<256x128xf32, #tpu.memory_space<vmem>>, vector<256x128xf32>
      %c0_16 = arith.constant 0 : index
      %c0_17 = arith.constant 0 : index
      %27 = vector.load %arg4[%c0_16, %c0_17] : memref<256x1xf32, #tpu.memory_space<vmem>>, vector<256x1xf32>
      %28 = vector.broadcast %27 : vector<256x1xf32> to vector<256x128xf32>
      %29 = arith.mulf %26, %28 : vector<256x128xf32>
      %c0_18 = arith.constant 0 : index
      %c0_19 = arith.constant 0 : index
      %c0_20 = arith.constant 0 : index
      %30 = vector.load %arg7[%c0_18, %c0_19, %c0_20] : memref<1x1x128xf32, #tpu.memory_space<vmem>>, vector<1x1x128xf32>
      %31 = vector.shape_cast %30 : vector<1x1x128xf32> to vector<1x128xf32>
      %32 = vector.broadcast %31 : vector<1x128xf32> to vector<256x128xf32>
      %33 = arith.addf %29, %32 : vector<256x128xf32>
      %c2_i32 = arith.constant 2 : i32
      %34 = arith.cmpi eq, %arg0, %c2_i32 : i32
      %cst_21 = arith.constant 0.000000e+00 : f32
      %35 = vector.broadcast %cst_21 : f32 to vector<256x128xf32>
      %36 = arith.cmpf ogt, %33, %35 : vector<256x128xf32>
      %37 = vector.broadcast %34 : i1 to vector<256x128xi1>
      %38 = arith.ori %36, %37 : vector<256x128xi1>
      %cst_22 = arith.constant 0.000000e+00 : f32
      %39 = vector.broadcast %cst_22 : f32 to vector<256x128xf32>
      %40 = arith.select %38, %33, %39 : vector<256x128xi1>, vector<256x128xf32>
      %41 = tpu.iota {dimensions = array<i32: 0>} : vector<256x128xi32>
      %c256_i32_23 = arith.constant 256 : i32
      %42 = arith.muli %arg1, %c256_i32_23 : i32
      %43 = vector.broadcast %42 : i32 to vector<256x128xi32>
      %44 = arith.addi %41, %43 : vector<256x128xi32>
      %c300_i32 = arith.constant 300 : i32
      %45 = vector.broadcast %c300_i32 : i32 to vector<256x128xi32>
      %46 = arith.cmpi slt, %44, %45 : vector<256x128xi32>
      %cst_24 = arith.constant 0.000000e+00 : f32
      %47 = vector.broadcast %cst_24 : f32 to vector<256x128xf32>
      %48 = arith.select %46, %40, %47 : vector<256x128xi1>, vector<256x128xf32>
      %c256_i32_25 = arith.constant 256 : i32
      %49 = arith.muli %arg1, %c256_i32_25 : i32
      %50 = tpu.assume_multiple %49, 256 : i32
      %51 = arith.truncf %48 : vector<256x128xf32> to vector<256x128xbf16>
      %52 = arith.index_cast %50 : i32 to index
      %c0_26 = arith.constant 0 : index
      %53 = vector.load %arg9[%52, %c0_26] : memref<512x128xbf16, #tpu.memory_space<vmem>>, vector<256x128xbf16>
      tpu.vector_store %arg9[%52, %c0_26], %51 {strides = array<i32>} : memref<512x128xbf16, #tpu.memory_space<vmem>>, vector<256x128xbf16>,
      %54 = arith.truncf %48 : vector<256x128xf32> to vector<256x128xbf16>
      %c0_27 = arith.constant 0 : index
      %c0_28 = arith.constant 0 : index
      %55 = vector.load %arg8[%c0_27, %c0_28] : memref<256x128xbf16, #tpu.memory_space<vmem>>, vector<256x128xbf16>
      tpu.vector_store %arg8[%c0_27, %c0_28], %54 {strides = array<i32>} : memref<256x128xbf16, #tpu.memory_space<vmem>>, vector<256x128xbf16>,
    } else {
    }
    return
  }
  func.func @transform_0(%arg0: i32, %arg1: i32, %arg2: i32) -> (i32, i32) {
    %c0_i32 = arith.constant 0 : i32
    return %arg1, %arg2 : i32, i32
  }
  func.func @transform_1(%arg0: i32, %arg1: i32, %arg2: i32) -> (i32, i32) {
    %c0_i32 = arith.constant 0 : i32
    %c0_i32_0 = arith.constant 0 : i32
    return %arg1, %c0_i32 : i32, i32
  }
  func.func @transform_2(%arg0: i32, %arg1: i32, %arg2: i32) -> (i32, i32) {
    %c0_i32 = arith.constant 0 : i32
    %0 = arith.cmpi eq, %arg0, %c0_i32 : i32
    %c0_i32_0 = arith.constant 0 : i32
    %1 = arith.cmpi eq, %arg1, %c0_i32_0 : i32
    %2 = arith.andi %0, %1 : i1
    %c0_i32_1 = arith.constant 0 : i32
    %3 = arith.select %2, %arg2, %c0_i32_1 : i32
    %c0_i32_2 = arith.constant 0 : i32
    %c0_i32_3 = arith.constant 0 : i32
    return %3, %c0_i32_2 : i32, i32
  }
  func.func @transform_3(%arg0: i32, %arg1: i32, %arg2: i32) -> (i32, i32, i32) {
    %c0_i32 = arith.constant 0 : i32
    %c0_i32_0 = arith.constant 0 : i32
    %c0_i32_1 = arith.constant 0 : i32
    return %arg0, %c0_i32, %c0_i32_0 : i32, i32, i32
  }
  func.func @transform_4(%arg0: i32, %arg1: i32, %arg2: i32) -> (i32, i32, i32) {
    %c0_i32 = arith.constant 0 : i32
    %c0_i32_0 = arith.constant 0 : i32
    %c0_i32_1 = arith.constant 0 : i32
    return %arg0, %c0_i32, %c0_i32_0 : i32, i32, i32
  }
  func.func @transform_5(%arg0: i32, %arg1: i32, %arg2: i32) -> (i32, i32) {
    %c0_i32 = arith.constant 0 : i32
    %c0_i32_0 = arith.constant 0 : i32
    return %arg1, %c0_i32 : i32, i32
  }
}

</mosaic_0001>

<llo_original>
// kernel: tpu_custom_call.1
$region0: #{tpu_custom_call.1}
  #allocation0 [shape = 'u32[]', space=smem, size = 0x4, offset = 0x4, fixed_abs, tag = 'smem constant byte address 0x4 - core index']
  #allocation1 [shape = 'u32[144,128]{1,0:T(1,128)}', space=vmem, size = 0x12000, scoped, tag = 'internal scratch']
  #allocation2 [shape = 'bf16[512,128]{1,0:T(16,128)(2,1)}', space=vmem, size = 0x20000, scoped, tag = 'scratch operand']
  #allocation3 [shape = 'bf16[512,128]{1,0:T(16,128)(2,1)}', space=vmem, size = 0x20000, scoped, tag = 'scratch operand']
  #allocation4 [shape = 'f32[256,128]{1,0:T(8,128)}', space=vmem, size = 0x20000, scoped, tag = 'scratch operand']
  %s0 = inlined_call_operand.vmem [shape: s8[512,512], index: 0, kind: input, shape index: {}]
  %s1 = inlined_call_operand.vmem [shape: f32[512,1], index: 1, kind: input, shape index: {}]
  %s2 = inlined_call_operand.hbm [shape: bf16[512,128], index: 2, kind: input, shape index: {}]
  %s3 = inlined_call_operand.hbm [shape: bf16[3,128,128], index: 3, kind: input, shape index: {}]
  %s4 = inlined_call_operand.vmem [shape: f32[3,1,128], index: 4, kind: input, shape index: {}]
  %s5 = inlined_call_operand.hbm [shape: bf16[512,128], index: 5, kind: output, shape index: {}]
  %s6 = sld [smem:[#allocation0]]
  $region100: #{tpu_custom_call.1} parent=0
    _
  %s8 = ssub.s32 1, %s6
  %s9 = scalar_select 0, %s8, %s6
  $region1: #{tpu_custom_call.1} parent=0
    #allocation5 [shape = 'u8[131072]{0}', space=vmem, size = 0x20000, scoped, tag = 'input window, operand 0']
    #allocation6 [shape = 'u8[131072]{0}', space=vmem, size = 0x20000, scoped, tag = 'input window, operand 2']
    #allocation7 [shape = 's32[2]{0}', space=sflag, size = 0x8, scoped, tag = 'scoped memory for tpu_custom_call.1']
    #allocation8 [shape = 's32[2]{0}', space=sflag, size = 0x8, scoped, tag = 'scoped memory for tpu_custom_call.1']
    #allocation9 [shape = 'u8[65536]{0}', space=vmem, size = 0x10000, scoped, tag = 'input window, operand 3']
    #allocation10 [shape = 's32[2]{0}', space=sflag, size = 0x8, scoped, tag = 'scoped memory for tpu_custom_call.1']
    #allocation11 [shape = 'u8[131072]{0}', space=vmem, size = 0x20000, scoped, tag = 'output window, operand 0']
    %10 = vsyncpa [#allocation7], 0
    %s11 = scalar_lea.sflag [#allocation7], 1
    %12 = vsyncpa %s11, 0
    %13 = vsyncpa [#allocation10], 0
    %s14 = scalar_lea.sflag [#allocation10], 1
    %15 = vsyncpa %s14, 0
    %16 = vsyncpa [#allocation8], 0
    %s17 = scalar_lea.sflag [#allocation8], 1
    %18 = vsyncpa %s17, 0
    loop: start=0, step=1, limit=14
    $region2: #{tpu_custom_call.1} parent=1 // loop_pre_header
      _
    $region3: #{tpu_custom_call.1} parent=1 // loop_header
      %s20 = sphi 0, %s24
      %p21 = scmp.ge.s32.totalorder %s20, 14
      %s27 = sphi 0, %s46
      %s28 = sphi 0, %s42
      %s29 = sphi 0, %s38
      %s30 = sphi 0, %s27
      %s31 = sphi 0, %s28
      %s32 = sphi 0, %s29
      %s33 = sphi 0, %s30
      %s34 = sphi 0, %s31
      %s35 = sphi 0, %s32
      %s51 = sphi 0, %s53
      %s54 = sphi 0, %s51
      %s55 = sphi 0, %s54
      %s71 = sphi 0, %s55
      %s77 = sphi 0, %s79
      %s80 = sphi 0, %s77
      %s81 = sphi 0, %s80
      %s97 = sphi 0, %s81
      %s113 = sphi 0, %s115
      %s116 = sphi 0, %s113
      %s117 = sphi 0, %s116
      %s133 = sphi 0, %s117
      %s139 = sphi 0, %s141
      %s142 = sphi 0, %s139
      %s143 = sphi 0, %s142
      %s159 = sphi 0, %s143
      %s165 = sphi 0, %s167
      %s168 = sphi 0, %s165
      %s169 = sphi 0, %s168
      %s185 = sphi 0, %s169
      %s191 = sphi 0, %s193
      %s194 = sphi 0, %s191
      %s195 = sphi 0, %s194
      %s211 = sphi 0, %s195
    $region4: #{tpu_custom_call.1} parent=1 // loop_header_branch
      %23 = sbr.rel (%p21) target = $region8
    $region5: #{tpu_custom_call.1} parent=1 // loop_body
      %s25 = ssub.s32 %s20, 1
      %s26 = ssub.s32 %s20, 2
      %s36 = sadd.s32 1, %s29
      %p37 = scmp.ge.s32.totalorder %s36, 2
      %s38 = scalar_select %p37, 0, %s36
      %s39 = sadd.s32 1, %s28
      %s40 = scalar_select %p37, %s39, %s28
      %p41 = scmp.ge.s32.totalorder %s40, 2
      %s42 = scalar_select %p41, 0, %s40
      %s43 = sadd.s32 1, %s27
      %s44 = scalar_select %p41, %s43, %s27
      %p45 = scmp.ge.s32.totalorder %s44, 3
      %s46 = scalar_select %p45, 0, %s44
      %s47 = ssub.s32 %s28, %s42
      %s48 = ssub.s32 %s29, %s38
      %s49 = sor.u32 %s47, %s48
      %p50 = scmp.eq.s32.totalorder %s49, 0
      %s52 = sadd.s32 %s51, 1
      %s53 = scalar_select %p50, %s51, %s52
      %p56 = pneg %p50
      %p57 = scmp.eq.s32.totalorder %s20, 11
      %p58 = por %p56, %p57
      %p59 = scmp.ne.s32.totalorder %s51, %s54
      %p60 = scmp.eq.s32.totalorder %s20, 0
      %p61 = por %p59, %p60
      %p62 = scmp.ne.s32.totalorder %s51, %s54
      %p63 = scmp.eq.s32.totalorder %s25, 11
      %p64 = por %p62, %p63
      %p65 = scmp.ne.s32.totalorder %s54, %s55
      %p66 = scmp.eq.s32.totalorder %s25, 0
      %p67 = por %p65, %p66
      %p68 = scmp.ne.s32.totalorder %s54, %s55
      %p69 = scmp.eq.s32.totalorder %s26, 11
      %p70 = por %p68, %p69
      %p72 = scmp.ne.s32.totalorder %s55, %s71
      %p73 = scmp.eq.s32.totalorder %s26, 0
      %p74 = por %p72, %p73
      %s75 = ssub.s32 %s28, %s42
      %p76 = scmp.eq.s32.totalorder %s75, 0
      %s78 = sadd.s32 %s77, 1
      %s79 = scalar_select %p76, %s77, %s78
      %p82 = pneg %p76
      %p83 = scmp.eq.s32.totalorder %s20, 11
      %p84 = por %p82, %p83
      %p85 = scmp.ne.s32.totalorder %s77, %s80
      %p86 = scmp.eq.s32.totalorder %s20, 0
      %p87 = por %p85, %p86
      %p88 = scmp.ne.s32.totalorder %s77, %s80
      %p89 = scmp.eq.s32.totalorder %s25, 11
      %p90 = por %p88, %p89
      %p91 = scmp.ne.s32.totalorder %s80, %s81
      %p92 = scmp.eq.s32.totalorder %s25, 0
      %p93 = por %p91, %p92
      %p94 = scmp.ne.s32.totalorder %s80, %s81
      %p95 = scmp.eq.s32.totalorder %s26, 11
      %p96 = por %p94, %p95
      %p98 = scmp.ne.s32.totalorder %s81, %s97
      %p99 = scmp.eq.s32.totalorder %s26, 0
      %p100 = por %p98, %p99
      %p101 = scmp.eq.s32.totalorder %s27, 0
      %p102 = scmp.eq.s32.totalorder %s28, 0
      %p103 = pnand %p101, %p102
      %p104 = pneg %p103
      %s105 = scalar_select %p104, %s29, 0
      %p106 = scmp.eq.s32.totalorder %s46, 0
      %p107 = scmp.eq.s32.totalorder %s42, 0
      %p108 = pnand %p106, %p107
      %p109 = pneg %p108
      %s110 = scalar_select %p109, %s38, 0
      %s111 = ssub.s32 %s105, %s110
      %p112 = scmp.eq.s32.totalorder %s111, 0
      %s114 = sadd.s32 %s113, 1
      %s115 = scalar_select %p112, %s113, %s114
      %p118 = pneg %p112
      %p119 = scmp.eq.s32.totalorder %s20, 11
      %p120 = por %p118, %p119
      %p121 = scmp.ne.s32.totalorder %s113, %s116
      %p122 = scmp.eq.s32.totalorder %s20, 0
      %p123 = por %p121, %p122
      %p124 = scmp.ne.s32.totalorder %s113, %s116
      %p125 = scmp.eq.s32.totalorder %s25, 11
      %p126 = por %p124, %p125
      %p127 = scmp.ne.s32.totalorder %s116, %s117
      %p128 = scmp.eq.s32.totalorder %s25, 0
      %p129 = por %p127, %p128
      %p130 = scmp.ne.s32.totalorder %s116, %s117
      %p131 = scmp.eq.s32.totalorder %s26, 11
      %p132 = por %p130, %p131
      %p134 = scmp.ne.s32.totalorder %s117, %s133
      %p135 = scmp.eq.s32.totalorder %s26, 0
      %p136 = por %p134, %p135
      %s137 = ssub.s32 %s27, %s46
      %p138 = scmp.eq.s32.totalorder %s137, 0
      %s140 = sadd.s32 %s139, 1
      %s141 = scalar_select %p138, %s139, %s140
      %p144 = pneg %p138
      %p145 = scmp.eq.s32.totalorder %s20, 11
      %p146 = por %p144, %p145
      %p147 = scmp.ne.s32.totalorder %s139, %s142
      %p148 = scmp.eq.s32.totalorder %s20, 0
      %p149 = por %p147, %p148
      %p150 = scmp.ne.s32.totalorder %s139, %s142
      %p151 = scmp.eq.s32.totalorder %s25, 11
      %p152 = por %p150, %p151
      %p153 = scmp.ne.s32.totalorder %s142, %s143
      %p154 = scmp.eq.s32.totalorder %s25, 0
      %p155 = por %p153, %p154
      %p156 = scmp.ne.s32.totalorder %s142, %s143
      %p157 = scmp.eq.s32.totalorder %s26, 11
      %p158 = por %p156, %p157
      %p160 = scmp.ne.s32.totalorder %s143, %s159
      %p161 = scmp.eq.s32.totalorder %s26, 0
      %p162 = por %p160, %p161
      %s163 = ssub.s32 %s27, %s46
      %p164 = scmp.eq.s32.totalorder %s163, 0
      %s166 = sadd.s32 %s165, 1
      %s167 = scalar_select %p164, %s165, %s166
      %p170 = pneg %p164
      %p171 = scmp.eq.s32.totalorder %s20, 11
      %p172 = por %p170, %p171
      %p173 = scmp.ne.s32.totalorder %s165, %s168
      %p174 = scmp.eq.s32.totalorder %s20, 0
      %p175 = por %p173, %p174
      %p176 = scmp.ne.s32.totalorder %s165, %s168
      %p177 = scmp.eq.s32.totalorder %s25, 11
      %p178 = por %p176, %p177
      %p179 = scmp.ne.s32.totalorder %s168, %s169
      %p180 = scmp.eq.s32.totalorder %s25, 0
      %p181 = por %p179, %p180
      %p182 = scmp.ne.s32.totalorder %s168, %s169
      %p183 = scmp.eq.s32.totalorder %s26, 11
      %p184 = por %p182, %p183
      %p186 = scmp.ne.s32.totalorder %s169, %s185
      %p187 = scmp.eq.s32.totalorder %s26, 0
      %p188 = por %p186, %p187
      %s189 = ssub.s32 %s28, %s42
      %p190 = scmp.eq.s32.totalorder %s189, 0
      %s192 = sadd.s32 %s191, 1
      %s193 = scalar_select %p190, %s191, %s192
      %p196 = pneg %p190
      %p197 = scmp.eq.s32.totalorder %s20, 11
      %p198 = por %p196, %p197
      %p199 = scmp.ne.s32.totalorder %s191, %s194
      %p200 = scmp.eq.s32.totalorder %s20, 0
      %p201 = por %p199, %p200
      %p202 = scmp.ne.s32.totalorder %s191, %s194
      %p203 = scmp.eq.s32.totalorder %s25, 11
      %p204 = por %p202, %p203
      %p205 = scmp.ne.s32.totalorder %s194, %s195
      %p206 = scmp.eq.s32.totalorder %s25, 0
      %p207 = por %p205, %p206
      %p208 = scmp.ne.s32.totalorder %s194, %s195
      %p209 = scmp.eq.s32.totalorder %s26, 11
      %p210 = por %p208, %p209
      %p212 = scmp.ne.s32.totalorder %s195, %s211
      %p213 = scmp.eq.s32.totalorder %s26, 0
      %p214 = por %p212, %p213
      %p215 = scmp.le.s32.totalorder 1, %s20
      %p216 = scmp.lt.s32.totalorder %s20, 13
      %p217 = pnand %p215, %p216
      %p218 = pneg %p217
      // Predicated region
      $region9: #{tpu_custom_call.1} parent=5 // pred_check
        _
      $region10: #{tpu_custom_call.1} parent=5 // pred_check_branch
        %220 = sbr.rel (%p217) target = $region12
      $region11: #{tpu_custom_call.1} parent=5 // pred_region
        %s221 = ssub.s32 %s20, 1
      $region12: #{tpu_custom_call.1} parent=5 // pred_fallthru
        _
      %p222 = scmp.lt.s32.totalorder %s20, 12
      // Predicated region
      $region13: #{tpu_custom_call.1} parent=5 // pred_check
        %p223 = pneg %p222
      $region14: #{tpu_custom_call.1} parent=5 // pred_check_branch
        %225 = sbr.rel (%p223) target = $region16
      $region15: #{tpu_custom_call.1} parent=5 // pred_region
        // Predicated region
        $region17: #{tpu_custom_call.1} parent=15 // pred_check
          %p226 = pneg %p61
        $region18: #{tpu_custom_call.1} parent=15 // pred_check_branch
          %228 = sbr.rel (%p226) target = $region20
        $region19: #{tpu_custom_call.1} parent=15 // pred_region
          %s229 = sand.u32 %s51, 1
          %s230 = sand.u32 %s51, 1
          %s231 = smul.addr %s230, 128
          %s232 = scalar_lea.vmem [#allocation5], %s231
          %s233 = smul.u32 8, %s28
          %s234 = smul.u32 2, %s29
          %s235 = smul.addr %s233, 4
          %s236 = sadd.s32 %s234, %s235
          %s237 = smul.addr %s236, 8
          %s238 = scalar_lea.vmem %s0, %s237
          // Predicated region
          $region21: #{tpu_custom_call.1} parent=19 // pred_check
            _
          $region22: #{tpu_custom_call.1} parent=19 // pred_check_branch
            %240 = sbr.rel (0) target = $region24
          $region23: #{tpu_custom_call.1} parent=19 // pred_region
            // Predicated region
            $region25: #{tpu_custom_call.1} parent=23 // pred_check
              _
            $region26: #{tpu_custom_call.1} parent=23 // pred_check_branch
              %242 = sbr.rel (0) target = $region28
            $region27: #{tpu_custom_call.1} parent=23 // pred_region
              loop: start=0, step=1, limit=1
              $region29: #{tpu_custom_call.1} parent=27 // loop_pre_header
                _
              $region30: #{tpu_custom_call.1} parent=27 // loop_header
                %s244 = sphi 0, %s248
                %p245 = scmp.ge.s32.totalorder %s244, 1
                %s249 = sphi %s238, %s238
                %s250 = sphi %s232, %s232
              $region31: #{tpu_custom_call.1} parent=27 // loop_header_branch
                %247 = sbr.rel (%p245) target = $region35
              $region32: #{tpu_custom_call.1} parent=27 // loop_body
                %v251 = vld [vmem:[%s249] sm:$0xff]
                %252 = vst [vmem:[%s250] sm:$0xff] %v251
                %v253 = vld [vmem:[%s249 + $0x8] sm:$0xff]
                %254 = vst [vmem:[%s250 + $0x8] sm:$0xff] %v253
                %v255 = vld [vmem:[%s249 + $0x20] sm:$0xff]
                %256 = vst [vmem:[%s250 + $0x10] sm:$0xff] %v255
                %v257 = vld [vmem:[%s249 + $0x28] sm:$0xff]
                %258 = vst [vmem:[%s250 + $0x18] sm:$0xff] %v257
                %v259 = vld [vmem:[%s249 + $0x40] sm:$0xff]
                %260 = vst [vmem:[%s250 + $0x20] sm:$0xff] %v259
                %v261 = vld [vmem:[%s249 + $0x48] sm:$0xff]
                %262 = vst [vmem:[%s250 + $0x28] sm:$0xff] %v261
                %v263 = vld [vmem:[%s249 + $0x60] sm:$0xff]
                %264 = vst [vmem:[%s250 + $0x30] sm:$0xff] %v263
                %v265 = vld [vmem:[%s249 + $0x68] sm:$0xff]
                %266 = vst [vmem:[%s250 + $0x38] sm:$0xff] %v265
                %v267 = vld [vmem:[%s249 + $0x80] sm:$0xff]
                %268 = vst [vmem:[%s250 + $0x40] sm:$0xff] %v267
                %v269 = vld [vmem:[%s249 + $0x88] sm:$0xff]
                %270 = vst [vmem:[%s250 + $0x48] sm:$0xff] %v269
                %v271 = vld [vmem:[%s249 + $0xa0] sm:$0xff]
                %272 = vst [vmem:[%s250 + $0x50] sm:$0xff] %v271
                %v273 = vld [vmem:[%s249 + $0xa8] sm:$0xff]
                %274 = vst [vmem:[%s250 + $0x58] sm:$0xff] %v273
                %v275 = vld [vmem:[%s249 + $0xc0] sm:$0xff]
                %276 = vst [vmem:[%s250 + $0x60] sm:$0xff] %v275
                %v277 = vld [vmem:[%s249 + $0xc8] sm:$0xff]
                %278 = vst [vmem:[%s250 + $0x68] sm:$0xff] %v277
                %v279 = vld [vmem:[%s249 + $0xe0] sm:$0xff]
                %280 = vst [vmem:[%s250 + $0x70] sm:$0xff] %v279
                %v281 = vld [vmem:[%s249 + $0xe8] sm:$0xff]
                %282 = vst [vmem:[%s250 + $0x78] sm:$0xff] %v281
              $region33: #{tpu_custom_call.1} parent=27 // loop_footer
                %s248 = sadd.s32 1, %s244
              $region34: #{tpu_custom_call.1} parent=27 // loop_footer_branch
                %243 = sbr.rel target = $region30
              $region35: #{tpu_custom_call.1} parent=27 // loop_exit
                _
            $region28: #{tpu_custom_call.1} parent=23 // pred_fallthru
              _
            // Predicated region
            $region36: #{tpu_custom_call.1} parent=23 // pred_check
              _
            $region37: #{tpu_custom_call.1} parent=23 // pred_check_branch
              %284 = sbr.rel target = $region39
            $region38: #{tpu_custom_call.1} parent=23 // pred_region
              _
            $region39: #{tpu_custom_call.1} parent=23 // pred_fallthru
              _
          $region24: #{tpu_custom_call.1} parent=19 // pred_fallthru
            _
          %285 = vnop
        $region20: #{tpu_custom_call.1} parent=15 // pred_fallthru
          _
        // Predicated region
        $region40: #{tpu_custom_call.1} parent=15 // pred_check
          %p286 = pneg %p87
        $region41: #{tpu_custom_call.1} parent=15 // pred_check_branch
          %288 = sbr.rel (%p286) target = $region43
        $region42: #{tpu_custom_call.1} parent=15 // pred_region
          %s289 = smul.u32 32, %s28
          %p290 = scmp.lt.s32.totalorder %s289, 63
          %s291 = scalar_select %p290, %s289, 63
          %s292 = smul.addr %s291, 8
          %s293 = scalar_lea.vmem %s1, %s292
          %s294 = smul.u32 32, %s28
        $region43: #{tpu_custom_call.1} parent=15 // pred_fallthru
          _
        // Predicated region
        $region44: #{tpu_custom_call.1} parent=15 // pred_check
          %p295 = pneg %p123
        $region45: #{tpu_custom_call.1} parent=15 // pred_check_branch
          %297 = sbr.rel (%p295) target = $region47
        $region46: #{tpu_custom_call.1} parent=15 // pred_region
          %s298 = sand.u32 %s113, 1
          %s299 = scalar_lea.sflag [#allocation7], %s298
          %s300 = sand.u32 %s113, 1
          %s301 = smul.addr %s300, 128
          %s302 = scalar_lea.vmem [#allocation6], %s301
          %p303 = scmp.eq.s32.totalorder %s27, 0
          %p304 = scmp.eq.s32.totalorder %s28, 0
          %p305 = pnand %p303, %p304
          %p306 = pneg %p305
          %s307 = scalar_select %p306, %s29, 0
          %s308 = smul.u32 32, %s307
          %s310 = ssub.s32 2048, 2048
          %311 = vsyncadd %s299, %s310
          %s312 = smul.addr %s308, 64
          %s313 = scalar_lea.hbm %s2, %s312
          %s314 = sshll.u32 %s302, 4
          %s315 = int_to_ptr.vmem [resolvable:$true] %s314
          %320 = dma.hbm_to_vmem [thread:$0]  %s313, 2048, %s315, %s299, 64, 64, 4
        $region47: #{tpu_custom_call.1} parent=15 // pred_fallthru
          _
        // Predicated region
        $region48: #{tpu_custom_call.1} parent=15 // pred_check
          %p321 = pneg %p149
        $region49: #{tpu_custom_call.1} parent=15 // pred_check_branch
          %323 = sbr.rel (%p321) target = $region51
        $region50: #{tpu_custom_call.1} parent=15 // pred_region
          %s324 = sand.u32 %s139, 1
          %s325 = scalar_lea.sflag [#allocation10], %s324
          %s326 = sand.u32 %s139, 1
          %s327 = smul.addr %s326, 64
          %s328 = scalar_lea.vmem [#allocation9], %s327
          %s330 = ssub.s32 1024, 1024
          %331 = vsyncadd %s325, %s330
          %s332 = smul.addr %s27, 16
          %s333 = smul.addr %s332, 64
          %s334 = scalar_lea.hbm %s3, %s333
          %s335 = sshll.u32 %s328, 4
          %s336 = int_to_ptr.vmem [resolvable:$true] %s335
          %341 = dma.hbm_to_vmem [thread:$0]  %s334, 1024, %s336, %s325, 64, 64, 4
        $region51: #{tpu_custom_call.1} parent=15 // pred_fallthru
          _
        // Predicated region
        $region52: #{tpu_custom_call.1} parent=15 // pred_check
          %p342 = pneg %p175
        $region53: #{tpu_custom_call.1} parent=15 // pred_check_branch
          %344 = sbr.rel (%p342) target = $region55
        $region54: #{tpu_custom_call.1} parent=15 // pred_region
          %p345 = scmp.lt.s32.totalorder %s27, 2
          %s346 = scalar_select %p345, %s27, 2
          %s347 = scalar_lea.vmem %s4, %s346
        $region55: #{tpu_custom_call.1} parent=15 // pred_fallthru
          _
      $region16: #{tpu_custom_call.1} parent=5 // pred_fallthru
        _
      %p348 = scmp.le.s32.totalorder 1, %s20
      %p349 = scmp.lt.s32.totalorder %s20, 13
      %p350 = pnand %p348, %p349
      %p351 = pneg %p350
      // Predicated region
      $region56: #{tpu_custom_call.1} parent=5 // pred_check
        _
      $region57: #{tpu_custom_call.1} parent=5 // pred_check_branch
        %353 = sbr.rel (%p350) target = $region59
      $region58: #{tpu_custom_call.1} parent=5 // pred_region
        %s354 = ssub.s32 %s20, 1
        %s355 = sand.u32 %s54, 1
        %s356 = sand.u32 %s54, 1
        %s357 = smul.addr %s356, 128
        %s358 = scalar_lea.vmem [#allocation5], %s357
        // Predicated region
        $region60: #{tpu_custom_call.1} parent=58 // pred_check
          %p359 = pneg %p67
        $region61: #{tpu_custom_call.1} parent=58 // pred_check_branch
          %361 = sbr.rel (%p359) target = $region63
        $region62: #{tpu_custom_call.1} parent=58 // pred_region
          _
        $region63: #{tpu_custom_call.1} parent=58 // pred_fallthru
          _
        %s362 = sand.u32 %s116, 1
        %s363 = scalar_lea.sflag [#allocation7], %s362
        %s364 = sand.u32 %s116, 1
        %s365 = smul.addr %s364, 128
        %s366 = scalar_lea.vmem [#allocation6], %s365
        // Predicated region
        $region64: #{tpu_custom_call.1} parent=58 // pred_check
          %p367 = pneg %p129
        $region65: #{tpu_custom_call.1} parent=58 // pred_check_branch
          %369 = sbr.rel (%p367) target = $region67
        $region66: #{tpu_custom_call.1} parent=58 // pred_region
          %370 = dma.done %s363, 2048
        $region67: #{tpu_custom_call.1} parent=58 // pred_fallthru
          _
        %s371 = sand.u32 %s142, 1
        %s372 = scalar_lea.sflag [#allocation10], %s371
        %s373 = sand.u32 %s142, 1
        %s374 = smul.addr %s373, 64
        %s375 = scalar_lea.vmem [#allocation9], %s374
        // Predicated region
        $region68: #{tpu_custom_call.1} parent=58 // pred_check
          %p376 = pneg %p155
        $region69: #{tpu_custom_call.1} parent=58 // pred_check_branch
          %378 = sbr.rel (%p376) target = $region71
        $region70: #{tpu_custom_call.1} parent=58 // pred_region
          %379 = dma.done %s372, 1024
        $region71: #{tpu_custom_call.1} parent=58 // pred_fallthru
          _
        %s380 = sand.u32 %s54, 1
        %s381 = sand.u32 %s54, 1
        %s382 = smul.addr %s381, 128
        %s383 = scalar_lea.vmem [#allocation5], %s382
        %p384 = pneg %p67
        %p385 = pneg %p64
        %s386 = smul.u32 32, %s31
        %p387 = scmp.lt.s32.totalorder %s386, 63
        %s388 = scalar_select %p387, %s386, 63
        %s389 = smul.addr %s388, 8
        %s390 = scalar_lea.vmem %s1, %s389
        %p391 = pneg %p93
        %p392 = pneg %p90
        %s393 = sand.u32 %s116, 1
        %s394 = scalar_lea.sflag [#allocation7], %s393
        %s395 = sand.u32 %s116, 1
        %s396 = smul.addr %s395, 128
        %s397 = scalar_lea.vmem [#allocation6], %s396
        %p398 = pneg %p129
        %p399 = pneg %p126
        %s400 = sand.u32 %s142, 1
        %s401 = scalar_lea.sflag [#allocation10], %s400
        %s402 = sand.u32 %s142, 1
        %s403 = smul.addr %s402, 64
        %s404 = scalar_lea.vmem [#allocation9], %s403
        %p405 = pneg %p155
        %p406 = pneg %p152
        %p407 = scmp.lt.s32.totalorder %s30, 2
        %s408 = scalar_select %p407, %s30, 2
        %s409 = scalar_lea.vmem %s4, %s408
        %p410 = pneg %p181
        %p411 = pneg %p178
        %p412 = pneg %p207
        %p413 = pneg %p204
        %s414 = sand.u32 %s194, 1
        %s415 = scalar_lea.sflag [#allocation8], %s414
        %s416 = sand.u32 %s194, 1
        %s417 = smul.addr %s416, 128
        %s418 = scalar_lea.vmem [#allocation11], %s417
        %s419 = smul.u32 8, %s31
        %s420 = smul.u32 2, %s32
        %s421 = smul.u32 32, %s31
        %p422 = scmp.lt.s32.totalorder %s421, 63
        %s423 = scalar_select %p422, %s421, 63
        %s424 = smul.addr %s423, 8
        %s425 = scalar_lea.vmem %s1, %s424
        %s426 = smul.u32 32, %s31
        %p427 = scmp.eq.s32.totalorder %s30, 0
        %p428 = scmp.eq.s32.totalorder %s31, 0
        %p429 = pnand %p427, %p428
        %p430 = pneg %p429
        %s431 = scalar_select %p430, %s32, 0
        %s432 = smul.u32 32, %s431
        %p433 = scmp.lt.s32.totalorder %s30, 2
        %s434 = scalar_select %p433, %s30, 2
        %s435 = scalar_lea.vmem %s4, %s434
        %s436 = smul.u32 32, %s31
        %s438 = smul.u32 %s32, 256
        %p439 = scmp.eq.s32.totalorder %s31, 0
        %p440 = scmp.eq.s32.totalorder %s30, 0
        %p441 = pnand %p439, %p440
        %p442 = pneg %p441
        // Predicated region
        $region72: #{tpu_custom_call.1} parent=58 // pred_check
          _
        $region73: #{tpu_custom_call.1} parent=58 // pred_check_branch
          %444 = sbr.rel (%p441) target = $region75
        $region74: #{tpu_custom_call.1} parent=58 // pred_region
          %v445 = vld [vmem:[%s366] sm:$0xf]
          %v446 = vld [vmem:[%s366 + $0x4] sm:$0xf]
          %v447 = vld [vmem:[%s366 + $0x8] sm:$0xf]
          %v448 = vld [vmem:[%s366 + $0xc] sm:$0xf]
          %v449 = vld [vmem:[%s366 + $0x10] sm:$0xf]
          %v450 = vld [vmem:[%s366 + $0x14] sm:$0xf]
          %v451 = vld [vmem:[%s366 + $0x18] sm:$0xf]
          %v452 = vld [vmem:[%s366 + $0x1c] sm:$0xf]
          %v453 = vld [vmem:[%s366 + $0x20] sm:$0xf]
          %v454 = vld [vmem:[%s366 + $0x24] sm:$0xf]
          %v455 = vld [vmem:[%s366 + $0x28] sm:$0xf]
          %v456 = vld [vmem:[%s366 + $0x2c] sm:$0xf]
          %v457 = vld [vmem:[%s366 + $0x30] sm:$0xf]
          %v458 = vld [vmem:[%s366 + $0x34] sm:$0xf]
          %v459 = vld [vmem:[%s366 + $0x38] sm:$0xf]
          %v460 = vld [vmem:[%s366 + $0x3c] sm:$0xf]
          %v461 = vld [vmem:[%s366 + $0x40] sm:$0xf]
          %v462 = vld [vmem:[%s366 + $0x44] sm:$0xf]
          %v463 = vld [vmem:[%s366 + $0x48] sm:$0xf]
          %v464 = vld [vmem:[%s366 + $0x4c] sm:$0xf]
          %v465 = vld [vmem:[%s366 + $0x50] sm:$0xf]
          %v466 = vld [vmem:[%s366 + $0x54] sm:$0xf]
          %v467 = vld [vmem:[%s366 + $0x58] sm:$0xf]
          %v468 = vld [vmem:[%s366 + $0x5c] sm:$0xf]
          %v469 = vld [vmem:[%s366 + $0x60] sm:$0xf]
          %v470 = vld [vmem:[%s366 + $0x64] sm:$0xf]
          %v471 = vld [vmem:[%s366 + $0x68] sm:$0xf]
          %v472 = vld [vmem:[%s366 + $0x6c] sm:$0xf]
          %v473 = vld [vmem:[%s366 + $0x70] sm:$0xf]
          %v474 = vld [vmem:[%s366 + $0x74] sm:$0xf]
          %v475 = vld [vmem:[%s366 + $0x78] sm:$0xf]
          %v476 = vld [vmem:[%s366 + $0x7c] sm:$0xf]
          %v477 = vld [vmem:[%s375] sm:$0xf]
          %v478 = vld [vmem:[%s375 + $0x4] sm:$0xf]
          %v479 = vld [vmem:[%s375 + $0x8] sm:$0xf]
          %v480 = vld [vmem:[%s375 + $0xc] sm:$0xf]
          %v481 = vld [vmem:[%s375 + $0x10] sm:$0xf]
          %v482 = vld [vmem:[%s375 + $0x14] sm:$0xf]
          %v483 = vld [vmem:[%s375 + $0x18] sm:$0xf]
          %v484 = vld [vmem:[%s375 + $0x1c] sm:$0xf]
          %v485 = vld [vmem:[%s375 + $0x20] sm:$0xf]
          %v486 = vld [vmem:[%s375 + $0x24] sm:$0xf]
          %v487 = vld [vmem:[%s375 + $0x28] sm:$0xf]
          %v488 = vld [vmem:[%s375 + $0x2c] sm:$0xf]
          %v489 = vld [vmem:[%s375 + $0x30] sm:$0xf]
          %v490 = vld [vmem:[%s375 + $0x34] sm:$0xf]
          %v491 = vld [vmem:[%s375 + $0x38] sm:$0xf]
          %v492 = vld [vmem:[%s375 + $0x3c] sm:$0xf]
          %v525 = vunpack.c.l.b16 %v445
          %v526 = vunpack.c.l.b16 %v446
          %v527 = vunpack.c.l.b16 %v447
          %v528 = vunpack.c.l.b16 %v448
          %v529 = vunpack.c.l.b16 %v449
          %v530 = vunpack.c.l.b16 %v450
          %v531 = vunpack.c.l.b16 %v451
          %v532 = vunpack.c.l.b16 %v452
          %v533 = vunpack.c.l.b16 %v453
          %v534 = vunpack.c.l.b16 %v454
          %v535 = vunpack.c.l.b16 %v455
          %v536 = vunpack.c.l.b16 %v456
          %v537 = vunpack.c.l.b16 %v457
          %v538 = vunpack.c.l.b16 %v458
          %v539 = vunpack.c.l.b16 %v459
          %v540 = vunpack.c.l.b16 %v460
          %v541 = vunpack.c.l.b16 %v461
          %v542 = vunpack.c.l.b16 %v462
          %v543 = vunpack.c.l.b16 %v463
          %v544 = vunpack.c.l.b16 %v464
          %v545 = vunpack.c.l.b16 %v465
          %v546 = vunpack.c.l.b16 %v466
          %v547 = vunpack.c.l.b16 %v467
          %v548 = vunpack.c.l.b16 %v468
          %v549 = vunpack.c.l.b16 %v469
          %v550 = vunpack.c.l.b16 %v470
          %v551 = vunpack.c.l.b16 %v471
          %v552 = vunpack.c.l.b16 %v472
          %v553 = vunpack.c.l.b16 %v473
          %v554 = vunpack.c.l.b16 %v474
          %v555 = vunpack.c.l.b16 %v475
          %v556 = vunpack.c.l.b16 %v476
          %v557 = vpack.c.b16 %v526, %v525
          %v558 = vpack.c.b16 %v528, %v527
          %v559 = vpack.c.b16 %v530, %v529
          %v560 = vpack.c.b16 %v532, %v531
          %v561 = vpack.c.b16 %v534, %v533
          %v562 = vpack.c.b16 %v536, %v535
          %v563 = vpack.c.b16 %v538, %v537
          %v564 = vpack.c.b16 %v540, %v539
          %v565 = vpack.c.b16 %v542, %v541
          %v566 = vpack.c.b16 %v544, %v543
          %v567 = vpack.c.b16 %v546, %v545
          %v568 = vpack.c.b16 %v548, %v547
          %v569 = vpack.c.b16 %v550, %v549
          %v570 = vpack.c.b16 %v552, %v551
          %v571 = vpack.c.b16 %v554, %v553
          %v572 = vpack.c.b16 %v556, %v555
          %v605 = vunpack.c.l.b16 %v477
          %v606 = vunpack.c.l.b16 %v478
          %v607 = vunpack.c.l.b16 %v479
          %v608 = vunpack.c.l.b16 %v480
          %v609 = vunpack.c.l.b16 %v481
          %v610 = vunpack.c.l.b16 %v482
          %v611 = vunpack.c.l.b16 %v483
          %v612 = vunpack.c.l.b16 %v484
          %v613 = vunpack.c.l.b16 %v485
          %v614 = vunpack.c.l.b16 %v486
          %v615 = vunpack.c.l.b16 %v487
          %v616 = vunpack.c.l.b16 %v488
          %v617 = vunpack.c.l.b16 %v489
          %v618 = vunpack.c.l.b16 %v490
          %v619 = vunpack.c.l.b16 %v491
          %v620 = vunpack.c.l.b16 %v492
          %v621 = vpack.c.b16 %v606, %v605
          %v622 = vpack.c.b16 %v608, %v607
          %v623 = vpack.c.b16 %v610, %v609
          %v624 = vpack.c.b16 %v612, %v611
          %v625 = vpack.c.b16 %v614, %v613
          %v626 = vpack.c.b16 %v616, %v615
          %v627 = vpack.c.b16 %v618, %v617
          %v628 = vpack.c.b16 %v620, %v619
          %637 = vmatprep.subr.bf16.mxu0 0
          %638 = vmatpush1.bf16.msra.mxu0 %v621
          %639 = vmatprep.subr.bf16.mxu0 0
          %640 = vmatpush1.bf16.msra.mxu0 %v622
          %641 = vmatprep.subr.bf16.mxu0 0
          %642 = vmatpush1.bf16.msra.mxu0 %v623
          %643 = vmatprep.subr.bf16.mxu0 0
          %644 = vmatpush1.bf16.msra.mxu0 %v624
          %645 = vmatprep.subr.bf16.mxu0 0
          %646 = vmatpush1.bf16.msra.mxu0 %v625
          %647 = vmatprep.subr.bf16.mxu0 0
          %648 = vmatpush1.bf16.msra.mxu0 %v626
          %649 = vmatprep.subr.bf16.mxu0 0
          %650 = vmatpush1.bf16.msra.mxu0 %v627
          %651 = vmatprep.subr.bf16.mxu0 0
          %652 = vmatpush1.bf16.msra.mxu0 %v628
          %653 = vmatprep.subr.bf16.mxu0 0
          %654 = vmatpush1.bf16.msra.mxu0 0
          %655 = vmatprep.subr.bf16.mxu0 0
          %656 = vmatpush1.bf16.msra.mxu0 0
          %657 = vmatprep.subr.bf16.mxu0 0
          %658 = vmatpush1.bf16.msra.mxu0 0
          %659 = vmatprep.subr.bf16.mxu0 0
          %660 = vmatpush1.bf16.msra.mxu0 0
          %661 = vmatprep.subr.bf16.mxu0 0
          %662 = vmatpush1.bf16.msra.mxu0 0
          %663 = vmatprep.subr.bf16.mxu0 0
          %664 = vmatpush1.bf16.msra.mxu0 0
          %665 = vmatprep.subr.bf16.mxu0 0
          %666 = vmatpush1.bf16.msra.mxu0 0
          %667 = vmatprep.subr.bf16.mxu0 0
          %668 = vmatpush1.bf16.msra.mxu0 0
          %669 = vmatprep.mubr.bf16.mxu0 0
          %670 = vmatmul.mubr.bf16.gmra.mrb[0].mxu0 %v557
          %v671 = vpop.f32.mrb[0].mxu0
          %v672 = vadd.f32 0.0, %v671
          %v673 = vpop.f32.mrb[0].mxu0
          %v674 = vpop.f32.mrb[0].mxu0
          %v675 = vadd.f32 0.0, %v674
          %v676 = vpop.f32.mrb[0].mxu0
          %677 = vmatprep.mubr.bf16.mxu0 0
          %678 = vmatmul.mubr.bf16.gmra.mrb[0].mxu0 %v558
          %v679 = vpop.f32.mrb[0].mxu0
          %v680 = vadd.f32 0.0, %v679
          %v681 = vpop.f32.mrb[0].mxu0
          %v682 = vpop.f32.mrb[0].mxu0
          %v683 = vadd.f32 0.0, %v682
          %v684 = vpop.f32.mrb[0].mxu0
          %685 = vmatprep.mubr.bf16.mxu0 0
          %686 = vmatmul.mubr.bf16.gmra.mrb[0].mxu0 %v559
          %v687 = vpop.f32.mrb[0].mxu0
          %v688 = vadd.f32 0.0, %v687
          %v689 = vpop.f32.mrb[0].mxu0
          %v690 = vpop.f32.mrb[0].mxu0
          %v691 = vadd.f32 0.0, %v690
          %v692 = vpop.f32.mrb[0].mxu0
          %693 = vmatprep.mubr.bf16.mxu0 0
          %694 = vmatmul.mubr.bf16.gmra.mrb[0].mxu0 %v560
          %v695 = vpop.f32.mrb[0].mxu0
          %v696 = vadd.f32 0.0, %v695
          %v697 = vpop.f32.mrb[0].mxu0
          %v698 = vpop.f32.mrb[0].mxu0
          %v699 = vadd.f32 0.0, %v698
          %v700 = vpop.f32.mrb[0].mxu0
          %701 = vmatprep.mubr.bf16.mxu0 0
          %702 = vmatmul.mubr.bf16.gmra.mrb[0].mxu0 %v561
          %v703 = vpop.f32.mrb[0].mxu0
          %v704 = vadd.f32 0.0, %v703
          %v705 = vpop.f32.mrb[0].mxu0
          %v706 = vpop.f32.mrb[0].mxu0
          %v707 = vadd.f32 0.0, %v706
          %v708 = vpop.f32.mrb[0].mxu0
          %709 = vmatprep.mubr.bf16.mxu0 0
          %710 = vmatmul.mubr.bf16.gmra.mrb[0].mxu0 %v562
          %v711 = vpop.f32.mrb[0].mxu0
          %v712 = vadd.f32 0.0, %v711
          %v713 = vpop.f32.mrb[0].mxu0
          %v714 = vpop.f32.mrb[0].mxu0
          %v715 = vadd.f32 0.0, %v714
          %v716 = vpop.f32.mrb[0].mxu0
          %717 = vmatprep.mubr.bf16.mxu0 0
          %718 = vmatmul.mubr.bf16.gmra.mrb[0].mxu0 %v563
          %v719 = vpop.f32.mrb[0].mxu0
          %v720 = vadd.f32 0.0, %v719
          %v721 = vpop.f32.mrb[0].mxu0
          %v722 = vpop.f32.mrb[0].mxu0
          %v723 = vadd.f32 0.0, %v722
          %v724 = vpop.f32.mrb[0].mxu0
          %725 = vmatprep.mubr.bf16.mxu0 0
          %726 = vmatmul.mubr.bf16.gmra.mrb[0].mxu0 %v564
          %v727 = vpop.f32.mrb[0].mxu0
          %v728 = vadd.f32 0.0, %v727
          %v729 = vpop.f32.mrb[0].mxu0
          %v730 = vpop.f32.mrb[0].mxu0
          %v731 = vadd.f32 0.0, %v730
          %v732 = vpop.f32.mrb[0].mxu0
          %733 = vmatprep.mubr.bf16.mxu0 0
          %734 = vmatmul.mubr.bf16.gmra.mrb[0].mxu0 %v565
          %v735 = vpop.f32.mrb[0].mxu0
          %v736 = vadd.f32 0.0, %v735
          %v737 = vpop.f32.mrb[0].mxu0
          %v738 = vpop.f32.mrb[0].mxu0
          %v739 = vadd.f32 0.0, %v738
          %v740 = vpop.f32.mrb[0].mxu0
          %741 = vmatprep.mubr.bf16.mxu0 0
          %742 = vmatmul.mubr.bf16.gmra.mrb[0].mxu0 %v566
          %v743 = vpop.f32.mrb[0].mxu0
          %v744 = vadd.f32 0.0, %v743
          %v745 = vpop.f32.mrb[0].mxu0
          %v746 = vpop.f32.mrb[0].mxu0
          %v747 = vadd.f32 0.0, %v746
          %v748 = vpop.f32.mrb[0].mxu0
          %749 = vmatprep.mubr.bf16.mxu0 0
          %750 = vmatmul.mubr.bf16.gmra.mrb[0].mxu0 %v567
          %v751 = vpop.f32.mrb[0].mxu0
          %v752 = vadd.f32 0.0, %v751
          %v753 = vpop.f32.mrb[0].mxu0
          %v754 = vpop.f32.mrb[0].mxu0
          %v755 = vadd.f32 0.0, %v754
          %v756 = vpop.f32.mrb[0].mxu0
          %757 = vmatprep.mubr.bf16.mxu0 0
          %758 = vmatmul.mubr.bf16.gmra.mrb[0].mxu0 %v568
          %v759 = vpop.f32.mrb[0].mxu0
          %v760 = vadd.f32 0.0, %v759
          %v761 = vpop.f32.mrb[0].mxu0
          %v762 = vpop.f32.mrb[0].mxu0
          %v763 = vadd.f32 0.0, %v762
          %v764 = vpop.f32.mrb[0].mxu0
          %765 = vmatprep.mubr.bf16.mxu0 0
          %766 = vmatmul.mubr.bf16.gmra.mrb[0].mxu0 %v569
          %v767 = vpop.f32.mrb[0].mxu0
          %v768 = vadd.f32 0.0, %v767
          %v769 = vpop.f32.mrb[0].mxu0
          %v770 = vpop.f32.mrb[0].mxu0
          %v771 = vadd.f32 0.0, %v770
          %v772 = vpop.f32.mrb[0].mxu0
          %773 = vmatprep.mubr.bf16.mxu0 0
          %774 = vmatmul.mubr.bf16.gmra.mrb[0].mxu0 %v570
          %v775 = vpop.f32.mrb[0].mxu0
          %v776 = vadd.f32 0.0, %v775
          %v777 = vpop.f32.mrb[0].mxu0
          %v778 = vpop.f32.mrb[0].mxu0
          %v779 = vadd.f32 0.0, %v778
          %v780 = vpop.f32.mrb[0].mxu0
          %781 = vmatprep.mubr.bf16.mxu0 0
          %782 = vmatmul.mubr.bf16.gmra.mrb[0].mxu0 %v571
          %v783 = vpop.f32.mrb[0].mxu0
          %v784 = vadd.f32 0.0, %v783
          %v785 = vpop.f32.mrb[0].mxu0
          %v786 = vpop.f32.mrb[0].mxu0
          %v787 = vadd.f32 0.0, %v786
          %v788 = vpop.f32.mrb[0].mxu0
          %789 = vmatprep.mubr.bf16.mxu0 0
          %790 = vmatmul.mubr.bf16.gmra.mrb[0].mxu0 %v572
          %v791 = vpop.f32.mrb[0].mxu0
          %v792 = vadd.f32 0.0, %v791
          %v793 = vpop.f32.mrb[0].mxu0
          %v794 = vpop.f32.mrb[0].mxu0
          %v795 = vadd.f32 0.0, %v794
          %v796 = vpop.f32.mrb[0].mxu0
          %797 = vdwg.mxu0
          %v798 = vpack.c.bf16 %v675, %v672
          %v799 = vpack.c.bf16 %v683, %v680
          %v800 = vpack.c.bf16 %v691, %v688
          %v801 = vpack.c.bf16 %v699, %v696
          %v802 = vpack.c.bf16 %v707, %v704
          %v803 = vpack.c.bf16 %v715, %v712
          %v804 = vpack.c.bf16 %v723, %v720
          %v805 = vpack.c.bf16 %v731, %v728
          %v806 = vpack.c.bf16 %v739, %v736
          %v807 = vpack.c.bf16 %v747, %v744
          %v808 = vpack.c.bf16 %v755, %v752
          %v809 = vpack.c.bf16 %v763, %v760
          %v810 = vpack.c.bf16 %v771, %v768
          %v811 = vpack.c.bf16 %v779, %v776
          %v812 = vpack.c.bf16 %v787, %v784
          %v813 = vpack.c.bf16 %v795, %v792
          %s814 = sshra.s32 %s438, 4
          %s815 = sand.u32 %s438, 15
          %s816 = smul.addr %s814, 8
          %s817 = scalar_lea.vmem [#allocation3], %s816
          %818 = vst [vmem:[%s817] sm:$0xff] %v798
          %819 = vst [vmem:[%s817 + $0x8] sm:$0xff] %v799
          %820 = vst [vmem:[%s817 + $0x10] sm:$0xff] %v800
          %821 = vst [vmem:[%s817 + $0x18] sm:$0xff] %v801
          %822 = vst [vmem:[%s817 + $0x20] sm:$0xff] %v802
          %823 = vst [vmem:[%s817 + $0x28] sm:$0xff] %v803
          %824 = vst [vmem:[%s817 + $0x30] sm:$0xff] %v804
          %825 = vst [vmem:[%s817 + $0x38] sm:$0xff] %v805
          %826 = vst [vmem:[%s817 + $0x40] sm:$0xff] %v806
          %827 = vst [vmem:[%s817 + $0x48] sm:$0xff] %v807
          %828 = vst [vmem:[%s817 + $0x50] sm:$0xff] %v808
          %829 = vst [vmem:[%s817 + $0x58] sm:$0xff] %v809
          %830 = vst [vmem:[%s817 + $0x60] sm:$0xff] %v810
          %831 = vst [vmem:[%s817 + $0x68] sm:$0xff] %v811
          %832 = vst [vmem:[%s817 + $0x70] sm:$0xff] %v812
          %833 = vst [vmem:[%s817 + $0x78] sm:$0xff] %v813
        $region75: #{tpu_custom_call.1} parent=58 // pred_fallthru
          _
        %p834 = scmp.gt.s32.totalorder %s30, 0
        %p835 = pnand %p439, %p834
        %p836 = pneg %p835
        // Predicated region
        $region76: #{tpu_custom_call.1} parent=58 // pred_check
          _
        $region77: #{tpu_custom_call.1} parent=58 // pred_check_branch
          %838 = sbr.rel (%p835) target = $region79
        $region78: #{tpu_custom_call.1} parent=58 // pred_region
          %s839 = sshra.s32 %s438, 4
          %s840 = sand.u32 %s438, 15
          %s841 = smul.addr %s839, 8
          %s842 = scalar_lea.vmem [#allocation2], %s841
          %v843 = vld [vmem:[%s842] sm:$0xff]
          %v844 = vld [vmem:[%s842 + $0x8] sm:$0xff]
          %v845 = vld [vmem:[%s842 + $0x10] sm:$0xff]
          %v846 = vld [vmem:[%s842 + $0x18] sm:$0xff]
          %v847 = vld [vmem:[%s842 + $0x20] sm:$0xff]
          %v848 = vld [vmem:[%s842 + $0x28] sm:$0xff]
          %v849 = vld [vmem:[%s842 + $0x30] sm:$0xff]
          %v850 = vld [vmem:[%s842 + $0x38] sm:$0xff]
          %v851 = vld [vmem:[%s842 + $0x40] sm:$0xff]
          %v852 = vld [vmem:[%s842 + $0x48] sm:$0xff]
          %v853 = vld [vmem:[%s842 + $0x50] sm:$0xff]
          %v854 = vld [vmem:[%s842 + $0x58] sm:$0xff]
          %v855 = vld [vmem:[%s842 + $0x60] sm:$0xff]
          %v856 = vld [vmem:[%s842 + $0x68] sm:$0xff]
          %v857 = vld [vmem:[%s842 + $0x70] sm:$0xff]
          %v858 = vld [vmem:[%s842 + $0x78] sm:$0xff]
          %v859 = vld [vmem:[%s375] sm:$0xf]
          %v860 = vld [vmem:[%s375 + $0x4] sm:$0xf]
          %v861 = vld [vmem:[%s375 + $0x8] sm:$0xf]
          %v862 = vld [vmem:[%s375 + $0xc] sm:$0xf]
          %v863 = vld [vmem:[%s375 + $0x10] sm:$0xf]
          %v864 = vld [vmem:[%s375 + $0x14] sm:$0xf]
          %v865 = vld [vmem:[%s375 + $0x18] sm:$0xf]
          %v866 = vld [vmem:[%s375 + $0x1c] sm:$0xf]
          %v867 = vld [vmem:[%s375 + $0x20] sm:$0xf]
          %v868 = vld [vmem:[%s375 + $0x24] sm:$0xf]
          %v869 = vld [vmem:[%s375 + $0x28] sm:$0xf]
          %v870 = vld [vmem:[%s375 + $0x2c] sm:$0xf]
          %v871 = vld [vmem:[%s375 + $0x30] sm:$0xf]
          %v872 = vld [vmem:[%s375 + $0x34] sm:$0xf]
          %v873 = vld [vmem:[%s375 + $0x38] sm:$0xf]
          %v874 = vld [vmem:[%s375 + $0x3c] sm:$0xf]
          %v891 = vunpack.c.l.b16 %v859
          %v892 = vunpack.c.l.b16 %v860
          %v893 = vunpack.c.l.b16 %v861
          %v894 = vunpack.c.l.b16 %v862
          %v895 = vunpack.c.l.b16 %v863
          %v896 = vunpack.c.l.b16 %v864
          %v897 = vunpack.c.l.b16 %v865
          %v898 = vunpack.c.l.b16 %v866
          %v899 = vunpack.c.l.b16 %v867
          %v900 = vunpack.c.l.b16 %v868
          %v901 = vunpack.c.l.b16 %v869
          %v902 = vunpack.c.l.b16 %v870
          %v903 = vunpack.c.l.b16 %v871
          %v904 = vunpack.c.l.b16 %v872
          %v905 = vunpack.c.l.b16 %v873
          %v906 = vunpack.c.l.b16 %v874
          %v907 = vpack.c.b16 %v892, %v891
          %v908 = vpack.c.b16 %v894, %v893
          %v909 = vpack.c.b16 %v896, %v895
          %v910 = vpack.c.b16 %v898, %v897
          %v911 = vpack.c.b16 %v900, %v899
          %v912 = vpack.c.b16 %v902, %v901
          %v913 = vpack.c.b16 %v904, %v903
          %v914 = vpack.c.b16 %v906, %v905
          %923 = vmatprep.subr.bf16.mxu0 0
          %924 = vmatpush1.bf16.msra.mxu0 %v907
          %925 = vmatprep.subr.bf16.mxu0 0
          %926 = vmatpush1.bf16.msra.mxu0 %v908
          %927 = vmatprep.subr.bf16.mxu0 0
          %928 = vmatpush1.bf16.msra.mxu0 %v909
          %929 = vmatprep.subr.bf16.mxu0 0
          %930 = vmatpush1.bf16.msra.mxu0 %v910
          %931 = vmatprep.subr.bf16.mxu0 0
          %932 = vmatpush1.bf16.msra.mxu0 %v911
          %933 = vmatprep.subr.bf16.mxu0 0
          %934 = vmatpush1.bf16.msra.mxu0 %v912
          %935 = vmatprep.subr.bf16.mxu0 0
          %936 = vmatpush1.bf16.msra.mxu0 %v913
          %937 = vmatprep.subr.bf16.mxu0 0
          %938 = vmatpush1.bf16.msra.mxu0 %v914
          %939 = vmatprep.subr.bf16.mxu0 0
          %940 = vmatpush1.bf16.msra.mxu0 0
          %941 = vmatprep.subr.bf16.mxu0 0
          %942 = vmatpush1.bf16.msra.mxu0 0
          %943 = vmatprep.subr.bf16.mxu0 0
          %944 = vmatpush1.bf16.msra.mxu0 0
          %945 = vmatprep.subr.bf16.mxu0 0
          %946 = vmatpush1.bf16.msra.mxu0 0
          %947 = vmatprep.subr.bf16.mxu0 0
          %948 = vmatpush1.bf16.msra.mxu0 0
          %949 = vmatprep.subr.bf16.mxu0 0
          %950 = vmatpush1.bf16.msra.mxu0 0
          %951 = vmatprep.subr.bf16.mxu0 0
          %952 = vmatpush1.bf16.msra.mxu0 0
          %953 = vmatprep.subr.bf16.mxu0 0
          %954 = vmatpush1.bf16.msra.mxu0 0
          %955 = vmatprep.mubr.bf16.mxu0 0
          %956 = vmatmul.mubr.bf16.gmra.mrb[0].mxu0 %v843
          %v957 = vpop.f32.mrb[0].mxu0
          %v958 = vadd.f32 0.0, %v957
          %v959 = vpop.f32.mrb[0].mxu0
          %v960 = vpop.f32.mrb[0].mxu0
          %v961 = vadd.f32 0.0, %v960
          %v962 = vpop.f32.mrb[0].mxu0
          %963 = vmatprep.mubr.bf16.mxu0 0
          %964 = vmatmul.mubr.bf16.gmra.mrb[0].mxu0 %v844
          %v965 = vpop.f32.mrb[0].mxu0
          %v966 = vadd.f32 0.0, %v965
          %v967 = vpop.f32.mrb[0].mxu0
          %v968 = vpop.f32.mrb[0].mxu0
          %v969 = vadd.f32 0.0, %v968
          %v970 = vpop.f32.mrb[0].mxu0
          %971 = vmatprep.mubr.bf16.mxu0 0
          %972 = vmatmul.mubr.bf16.gmra.mrb[0].mxu0 %v845
          %v973 = vpop.f32.mrb[0].mxu0
          %v974 = vadd.f32 0.0, %v973
          %v975 = vpop.f32.mrb[0].mxu0
          %v976 = vpop.f32.mrb[0].mxu0
          %v977 = vadd.f32 0.0, %v976
          %v978 = vpop.f32.mrb[0].mxu0
          %979 = vmatprep.mubr.bf16.mxu0 0
          %980 = vmatmul.mubr.bf16.gmra.mrb[0].mxu0 %v846
          %v981 = vpop.f32.mrb[0].mxu0
          %v982 = vadd.f32 0.0, %v981
          %v983 = vpop.f32.mrb[0].mxu0
          %v984 = vpop.f32.mrb[0].mxu0
          %v985 = vadd.f32 0.0, %v984
          %v986 = vpop.f32.mrb[0].mxu0
          %987 = vmatprep.mubr.bf16.mxu0 0
          %988 = vmatmul.mubr.bf16.gmra.mrb[0].mxu0 %v847
          %v989 = vpop.f32.mrb[0].mxu0
          %v990 = vadd.f32 0.0, %v989
          %v991 = vpop.f32.mrb[0].mxu0
          %v992 = vpop.f32.mrb[0].mxu0
          %v993 = vadd.f32 0.0, %v992
          %v994 = vpop.f32.mrb[0].mxu0
          %995 = vmatprep.mubr.bf16.mxu0 0
          %996 = vmatmul.mubr.bf16.gmra.mrb[0].mxu0 %v848
          %v997 = vpop.f32.mrb[0].mxu0
          %v998 = vadd.f32 0.0, %v997
          %v999 = vpop.f32.mrb[0].mxu0
          %v1000 = vpop.f32.mrb[0].mxu0
          %v1001 = vadd.f32 0.0, %v1000
          %v1002 = vpop.f32.mrb[0].mxu0
          %1003 = vmatprep.mubr.bf16.mxu0 0
          %1004 = vmatmul.mubr.bf16.gmra.mrb[0].mxu0 %v849
          %v1005 = vpop.f32.mrb[0].mxu0
          %v1006 = vadd.f32 0.0, %v1005
          %v1007 = vpop.f32.mrb[0].mxu0
          %v1008 = vpop.f32.mrb[0].mxu0
          %v1009 = vadd.f32 0.0, %v1008
          %v1010 = vpop.f32.mrb[0].mxu0
          %1011 = vmatprep.mubr.bf16.mxu0 0
          %1012 = vmatmul.mubr.bf16.gmra.mrb[0].mxu0 %v850
          %v1013 = vpop.f32.mrb[0].mxu0
          %v1014 = vadd.f32 0.0, %v1013
          %v1015 = vpop.f32.mrb[0].mxu0
          %v1016 = vpop.f32.mrb[0].mxu0
          %v1017 = vadd.f32 0.0, %v1016
          %v1018 = vpop.f32.mrb[0].mxu0
          %1019 = vmatprep.mubr.bf16.mxu0 0
          %1020 = vmatmul.mubr.bf16.gmra.mrb[0].mxu0 %v851
          %v1021 = vpop.f32.mrb[0].mxu0
          %v1022 = vadd.f32 0.0, %v1021
          %v1023 = vpop.f32.mrb[0].mxu0
          %v1024 = vpop.f32.mrb[0].mxu0
          %v1025 = vadd.f32 0.0, %v1024
          %v1026 = vpop.f32.mrb[0].mxu0
          %1027 = vmatprep.mubr.bf16.mxu0 0
          %1028 = vmatmul.mubr.bf16.gmra.mrb[0].mxu0 %v852
          %v1029 = vpop.f32.mrb[0].mxu0
          %v1030 = vadd.f32 0.0, %v1029
          %v1031 = vpop.f32.mrb[0].mxu0
          %v1032 = vpop.f32.mrb[0].mxu0
          %v1033 = vadd.f32 0.0, %v1032
          %v1034 = vpop.f32.mrb[0].mxu0
          %1035 = vmatprep.mubr.bf16.mxu0 0
          %1036 = vmatmul.mubr.bf16.gmra.mrb[0].mxu0 %v853
          %v1037 = vpop.f32.mrb[0].mxu0
          %v1038 = vadd.f32 0.0, %v1037
          %v1039 = vpop.f32.mrb[0].mxu0
          %v1040 = vpop.f32.mrb[0].mxu0
          %v1041 = vadd.f32 0.0, %v1040
          %v1042 = vpop.f32.mrb[0].mxu0
          %1043 = vmatprep.mubr.bf16.mxu0 0
          %1044 = vmatmul.mubr.bf16.gmra.mrb[0].mxu0 %v854
          %v1045 = vpop.f32.mrb[0].mxu0
          %v1046 = vadd.f32 0.0, %v1045
          %v1047 = vpop.f32.mrb[0].mxu0
          %v1048 = vpop.f32.mrb[0].mxu0
          %v1049 = vadd.f32 0.0, %v1048
          %v1050 = vpop.f32.mrb[0].mxu0
          %1051 = vmatprep.mubr.bf16.mxu0 0
          %1052 = vmatmul.mubr.bf16.gmra.mrb[0].mxu0 %v855
          %v1053 = vpop.f32.mrb[0].mxu0
          %v1054 = vadd.f32 0.0, %v1053
          %v1055 = vpop.f32.mrb[0].mxu0
          %v1056 = vpop.f32.mrb[0].mxu0
          %v1057 = vadd.f32 0.0, %v1056
          %v1058 = vpop.f32.mrb[0].mxu0
          %1059 = vmatprep.mubr.bf16.mxu0 0
          %1060 = vmatmul.mubr.bf16.gmra.mrb[0].mxu0 %v856
          %v1061 = vpop.f32.mrb[0].mxu0
          %v1062 = vadd.f32 0.0, %v1061
          %v1063 = vpop.f32.mrb[0].mxu0
          %v1064 = vpop.f32.mrb[0].mxu0
          %v1065 = vadd.f32 0.0, %v1064
          %v1066 = vpop.f32.mrb[0].mxu0
          %1067 = vmatprep.mubr.bf16.mxu0 0
          %1068 = vmatmul.mubr.bf16.gmra.mrb[0].mxu0 %v857
          %v1069 = vpop.f32.mrb[0].mxu0
          %v1070 = vadd.f32 0.0, %v1069
          %v1071 = vpop.f32.mrb[0].mxu0
          %v1072 = vpop.f32.mrb[0].mxu0
          %v1073 = vadd.f32 0.0, %v1072
          %v1074 = vpop.f32.mrb[0].mxu0
          %1075 = vmatprep.mubr.bf16.mxu0 0
          %1076 = vmatmul.mubr.bf16.gmra.mrb[0].mxu0 %v858
          %v1077 = vpop.f32.mrb[0].mxu0
          %v1078 = vadd.f32 0.0, %v1077
          %v1079 = vpop.f32.mrb[0].mxu0
          %v1080 = vpop.f32.mrb[0].mxu0
          %v1081 = vadd.f32 0.0, %v1080
          %v1082 = vpop.f32.mrb[0].mxu0
          %1083 = vdwg.mxu0
          %v1084 = vpack.c.bf16 %v961, %v958
          %v1085 = vpack.c.bf16 %v969, %v966
          %v1086 = vpack.c.bf16 %v977, %v974
          %v1087 = vpack.c.bf16 %v985, %v982
          %v1088 = vpack.c.bf16 %v993, %v990
          %v1089 = vpack.c.bf16 %v1001, %v998
          %v1090 = vpack.c.bf16 %v1009, %v1006
          %v1091 = vpack.c.bf16 %v1017, %v1014
          %v1092 = vpack.c.bf16 %v1025, %v1022
          %v1093 = vpack.c.bf16 %v1033, %v1030
          %v1094 = vpack.c.bf16 %v1041, %v1038
          %v1095 = vpack.c.bf16 %v1049, %v1046
          %v1096 = vpack.c.bf16 %v1057, %v1054
          %v1097 = vpack.c.bf16 %v1065, %v1062
          %v1098 = vpack.c.bf16 %v1073, %v1070
          %v1099 = vpack.c.bf16 %v1081, %v1078
          %s1100 = smul.addr %s839, 8
          %s1101 = scalar_lea.vmem [#allocation3], %s1100
          %1102 = vst [vmem:[%s1101] sm:$0xff] %v1084
          %1103 = vst [vmem:[%s1101 + $0x8] sm:$0xff] %v1085
          %1104 = vst [vmem:[%s1101 + $0x10] sm:$0xff] %v1086
          %1105 = vst [vmem:[%s1101 + $0x18] sm:$0xff] %v1087
          %1106 = vst [vmem:[%s1101 + $0x20] sm:$0xff] %v1088
          %1107 = vst [vmem:[%s1101 + $0x28] sm:$0xff] %v1089
          %1108 = vst [vmem:[%s1101 + $0x30] sm:$0xff] %v1090
          %1109 = vst [vmem:[%s1101 + $0x38] sm:$0xff] %v1091
          %1110 = vst [vmem:[%s1101 + $0x40] sm:$0xff] %v1092
          %1111 = vst [vmem:[%s1101 + $0x48] sm:$0xff] %v1093
          %1112 = vst [vmem:[%s1101 + $0x50] sm:$0xff] %v1094
          %1113 = vst [vmem:[%s1101 + $0x58] sm:$0xff] %v1095
          %1114 = vst [vmem:[%s1101 + $0x60] sm:$0xff] %v1096
          %1115 = vst [vmem:[%s1101 + $0x68] sm:$0xff] %v1097
          %1116 = vst [vmem:[%s1101 + $0x70] sm:$0xff] %v1098
          %1117 = vst [vmem:[%s1101 + $0x78] sm:$0xff] %v1099
        $region79: #{tpu_custom_call.1} parent=58 // pred_fallthru
          _
        %p1118 = scmp.eq.s32.totalorder %s32, 0
        // Predicated region
        $region80: #{tpu_custom_call.1} parent=58 // pred_check
          %p1119 = pneg %p1118
        $region81: #{tpu_custom_call.1} parent=58 // pred_check_branch
          %1121 = sbr.rel (%p1119) target = $region83
        $region82: #{tpu_custom_call.1} parent=58 // pred_region
          %1122 = vst [vmem:[#allocation4] sm:$0xff] 0.0
          %1123 = vst [vmem:[#allocation4 + $0x8] sm:$0xff] 0.0
          %1124 = vst [vmem:[#allocation4 + $0x10] sm:$0xff] 0.0
          %1125 = vst [vmem:[#allocation4 + $0x18] sm:$0xff] 0.0
          %1126 = vst [vmem:[#allocation4 + $0x20] sm:$0xff] 0.0
          %1127 = vst [vmem:[#allocation4 + $0x28] sm:$0xff] 0.0
          %1128 = vst [vmem:[#allocation4 + $0x30] sm:$0xff] 0.0
          %1129 = vst [vmem:[#allocation4 + $0x38] sm:$0xff] 0.0
          %1130 = vst [vmem:[#allocation4 + $0x40] sm:$0xff] 0.0
          %1131 = vst [vmem:[#allocation4 + $0x48] sm:$0xff] 0.0
          %1132 = vst [vmem:[#allocation4 + $0x50] sm:$0xff] 0.0
          %1133 = vst [vmem:[#allocation4 + $0x58] sm:$0xff] 0.0
          %1134 = vst [vmem:[#allocation4 + $0x60] sm:$0xff] 0.0
          %1135 = vst [vmem:[#allocation4 + $0x68] sm:$0xff] 0.0
          %1136 = vst [vmem:[#allocation4 + $0x70] sm:$0xff] 0.0
          %1137 = vst [vmem:[#allocation4 + $0x78] sm:$0xff] 0.0
          %1138 = vst [vmem:[#allocation4 + $0x80] sm:$0xff] 0.0
          %1139 = vst [vmem:[#allocation4 + $0x88] sm:$0xff] 0.0
          %1140 = vst [vmem:[#allocation4 + $0x90] sm:$0xff] 0.0
          %1141 = vst [vmem:[#allocation4 + $0x98] sm:$0xff] 0.0
          %1142 = vst [vmem:[#allocation4 + $0xa0] sm:$0xff] 0.0
          %1143 = vst [vmem:[#allocation4 + $0xa8] sm:$0xff] 0.0
          %1144 = vst [vmem:[#allocation4 + $0xb0] sm:$0xff] 0.0
          %1145 = vst [vmem:[#allocation4 + $0xb8] sm:$0xff] 0.0
          %1146 = vst [vmem:[#allocation4 + $0xc0] sm:$0xff] 0.0
          %1147 = vst [vmem:[#allocation4 + $0xc8] sm:$0xff] 0.0
          %1148 = vst [vmem:[#allocation4 + $0xd0] sm:$0xff] 0.0
          %1149 = vst [vmem:[#allocation4 + $0xd8] sm:$0xff] 0.0
          %1150 = vst [vmem:[#allocation4 + $0xe0] sm:$0xff] 0.0
          %1151 = vst [vmem:[#allocation4 + $0xe8] sm:$0xff] 0.0
          %1152 = vst [vmem:[#allocation4 + $0xf0] sm:$0xff] 0.0
          %1153 = vst [vmem:[#allocation4 + $0xf8] sm:$0xff] 0.0
        $region83: #{tpu_custom_call.1} parent=58 // pred_fallthru
          _
        %v1154 = vld [vmem:[#allocation4] sm:$0xff]
        %v1155 = vld [vmem:[#allocation4 + $0x8] sm:$0xff]
        %v1156 = vld [vmem:[#allocation4 + $0x10] sm:$0xff]
        %v1157 = vld [vmem:[#allocation4 + $0x18] sm:$0xff]
        %v1158 = vld [vmem:[#allocation4 + $0x20] sm:$0xff]
        %v1159 = vld [vmem:[#allocation4 + $0x28] sm:$0xff]
        %v1160 = vld [vmem:[#allocation4 + $0x30] sm:$0xff]
        %v1161 = vld [vmem:[#allocation4 + $0x38] sm:$0xff]
        %v1162 = vld [vmem:[#allocation4 + $0x40] sm:$0xff]
        %v1163 = vld [vmem:[#allocation4 + $0x48] sm:$0xff]
        %v1164 = vld [vmem:[#allocation4 + $0x50] sm:$0xff]
        %v1165 = vld [vmem:[#allocation4 + $0x58] sm:$0xff]
        %v1166 = vld [vmem:[#allocation4 + $0x60] sm:$0xff]
        %v1167 = vld [vmem:[#allocation4 + $0x68] sm:$0xff]
        %v1168 = vld [vmem:[#allocation4 + $0x70] sm:$0xff]
        %v1169 = vld [vmem:[#allocation4 + $0x78] sm:$0xff]
        %v1170 = vld [vmem:[#allocation4 + $0x80] sm:$0xff]
        %v1171 = vld [vmem:[#allocation4 + $0x88] sm:$0xff]
        %v1172 = vld [vmem:[#allocation4 + $0x90] sm:$0xff]
        %v1173 = vld [vmem:[#allocation4 + $0x98] sm:$0xff]
        %v1174 = vld [vmem:[#allocation4 + $0xa0] sm:$0xff]
        %v1175 = vld [vmem:[#allocation4 + $0xa8] sm:$0xff]
        %v1176 = vld [vmem:[#allocation4 + $0xb0] sm:$0xff]
        %v1177 = vld [vmem:[#allocation4 + $0xb8] sm:$0xff]
        %v1178 = vld [vmem:[#allocation4 + $0xc0] sm:$0xff]
        %v1179 = vld [vmem:[#allocation4 + $0xc8] sm:$0xff]
        %v1180 = vld [vmem:[#allocation4 + $0xd0] sm:$0xff]
        %v1181 = vld [vmem:[#allocation4 + $0xd8] sm:$0xff]
        %v1182 = vld [vmem:[#allocation4 + $0xe0] sm:$0xff]
        %v1183 = vld [vmem:[#allocation4 + $0xe8] sm:$0xff]
        %v1184 = vld [vmem:[#allocation4 + $0xf0] sm:$0xff]
        %v1185 = vld [vmem:[#allocation4 + $0xf8] sm:$0xff]
        %v1186 = vld [vmem:[%s358] sm:$0xff]
        %v1187 = vld [vmem:[%s358 + $0x8] sm:$0xff]
        %v1188 = vld [vmem:[%s358 + $0x10] sm:$0xff]
        %v1189 = vld [vmem:[%s358 + $0x18] sm:$0xff]
        %v1190 = vld [vmem:[%s358 + $0x20] sm:$0xff]
        %v1191 = vld [vmem:[%s358 + $0x28] sm:$0xff]
        %v1192 = vld [vmem:[%s358 + $0x30] sm:$0xff]
        %v1193 = vld [vmem:[%s358 + $0x38] sm:$0xff]
        %v1194 = vld [vmem:[%s358 + $0x40] sm:$0xff]
        %v1195 = vld [vmem:[%s358 + $0x48] sm:$0xff]
        %v1196 = vld [vmem:[%s358 + $0x50] sm:$0xff]
        %v1197 = vld [vmem:[%s358 + $0x58] sm:$0xff]
        %v1198 = vld [vmem:[%s358 + $0x60] sm:$0xff]
        %v1199 = vld [vmem:[%s358 + $0x68] sm:$0xff]
        %v1200 = vld [vmem:[%s358 + $0x70] sm:$0xff]
        %v1201 = vld [vmem:[%s358 + $0x78] sm:$0xff]
        %v1202 = vunpack.c.l.s8.bf16 %v1186
        %v1203 = vunpack.c.l.s8.bf16 %v1187
        %v1204 = vunpack.c.h.s8.bf16 %v1186
        %v1205 = vunpack.c.h.s8.bf16 %v1187
        %v1206 = vunpack.c.l.s8.bf16 %v1188
        %v1207 = vunpack.c.l.s8.bf16 %v1189
        %v1208 = vunpack.c.h.s8.bf16 %v1188
        %v1209 = vunpack.c.h.s8.bf16 %v1189
        %v1210 = vunpack.c.l.s8.bf16 %v1190
        %v1211 = vunpack.c.l.s8.bf16 %v1191
        %v1212 = vunpack.c.h.s8.bf16 %v1190
        %v1213 = vunpack.c.h.s8.bf16 %v1191
        %v1214 = vunpack.c.l.s8.bf16 %v1192
        %v1215 = vunpack.c.l.s8.bf16 %v1193
        %v1216 = vunpack.c.h.s8.bf16 %v1192
        %v1217 = vunpack.c.h.s8.bf16 %v1193
        %v1218 = vunpack.c.l.s8.bf16 %v1194
        %v1219 = vunpack.c.l.s8.bf16 %v1195
        %v1220 = vunpack.c.h.s8.bf16 %v1194
        %v1221 = vunpack.c.h.s8.bf16 %v1195
        %v1222 = vunpack.c.l.s8.bf16 %v1196
        %v1223 = vunpack.c.l.s8.bf16 %v1197
        %v1224 = vunpack.c.h.s8.bf16 %v1196
        %v1225 = vunpack.c.h.s8.bf16 %v1197
        %v1226 = vunpack.c.l.s8.bf16 %v1198
        %v1227 = vunpack.c.l.s8.bf16 %v1199
        %v1228 = vunpack.c.h.s8.bf16 %v1198
        %v1229 = vunpack.c.h.s8.bf16 %v1199
        %v1230 = vunpack.c.l.s8.bf16 %v1200
        %v1231 = vunpack.c.l.s8.bf16 %v1201
        %v1232 = vunpack.c.h.s8.bf16 %v1200
        %v1233 = vunpack.c.h.s8.bf16 %v1201
        %s1234 = sshra.s32 %s438, 4
        %s1235 = sand.u32 %s438, 15
        %s1236 = smul.addr %s1234, 8
        %s1237 = scalar_lea.vmem [#allocation3], %s1236
        %v1238 = vld [vmem:[%s1237] sm:$0xff]
        %v1239 = vld [vmem:[%s1237 + $0x8] sm:$0xff]
        %v1240 = vld [vmem:[%s1237 + $0x10] sm:$0xff]
        %v1241 = vld [vmem:[%s1237 + $0x18] sm:$0xff]
        %v1242 = vld [vmem:[%s1237 + $0x20] sm:$0xff]
        %v1243 = vld [vmem:[%s1237 + $0x28] sm:$0xff]
        %v1244 = vld [vmem:[%s1237 + $0x30] sm:$0xff]
        %v1245 = vld [vmem:[%s1237 + $0x38] sm:$0xff]
        %v1246 = vld [vmem:[%s1237 + $0x40] sm:$0xff]
        %v1247 = vld [vmem:[%s1237 + $0x48] sm:$0xff]
        %v1248 = vld [vmem:[%s1237 + $0x50] sm:$0xff]
        %v1249 = vld [vmem:[%s1237 + $0x58] sm:$0xff]
        %v1250 = vld [vmem:[%s1237 + $0x60] sm:$0xff]
        %v1251 = vld [vmem:[%s1237 + $0x68] sm:$0xff]
        %v1252 = vld [vmem:[%s1237 + $0x70] sm:$0xff]
        %v1253 = vld [vmem:[%s1237 + $0x78] sm:$0xff]
        %1254 = vmatprep.subr.bf16.mxu0 0
        %1255 = vmatpush1.bf16.msra.mxu0 %v1238
        %1256 = vmatprep.subr.bf16.mxu0 0
        %1257 = vmatpush1.bf16.msra.mxu0 %v1239
        %1258 = vmatprep.subr.bf16.mxu0 0
        %1259 = vmatpush1.bf16.msra.mxu0 %v1240
        %1260 = vmatprep.subr.bf16.mxu0 0
        %1261 = vmatpush1.bf16.msra.mxu0 %v1241
        %1262 = vmatprep.subr.bf16.mxu0 0
        %1263 = vmatpush1.bf16.msra.mxu0 %v1242
        %1264 = vmatprep.subr.bf16.mxu0 0
        %1265 = vmatpush1.bf16.msra.mxu0 %v1243
        %1266 = vmatprep.subr.bf16.mxu0 0
        %1267 = vmatpush1.bf16.msra.mxu0 %v1244
        %1268 = vmatprep.subr.bf16.mxu0 0
        %1269 = vmatpush1.bf16.msra.mxu0 %v1245
        %1270 = vmatprep.subr.bf16.mxu0 0
        %1271 = vmatpush1.bf16.msra.mxu0 %v1246
        %1272 = vmatprep.subr.bf16.mxu0 0
        %1273 = vmatpush1.bf16.msra.mxu0 %v1247
        %1274 = vmatprep.subr.bf16.mxu0 0
        %1275 = vmatpush1.bf16.msra.mxu0 %v1248
        %1276 = vmatprep.subr.bf16.mxu0 0
        %1277 = vmatpush1.bf16.msra.mxu0 %v1249
        %1278 = vmatprep.subr.bf16.mxu0 0
        %1279 = vmatpush1.bf16.msra.mxu0 %v1250
        %1280 = vmatprep.subr.bf16.mxu0 0
        %1281 = vmatpush1.bf16.msra.mxu0 %v1251
        %1282 = vmatprep.subr.bf16.mxu0 0
        %1283 = vmatpush1.bf16.msra.mxu0 %v1252
        %1284 = vmatprep.subr.bf16.mxu0 0
        %1285 = vmatpush1.bf16.msra.mxu0 %v1253
        %1286 = vmatprep.mubr.bf16.mxu0 %v1203
        %1287 = vmatmul.mubr.bf16.gmra.mrb[0].mxu0 %v1202
        %v1288 = vpop.f32.mrb[0].mxu0
        %v1289 = vadd.f32 0.0, %v1288
        %v1290 = vpop.f32.mrb[0].mxu0
        %v1291 = vpop.f32.mrb[0].mxu0
        %v1292 = vadd.f32 0.0, %v1291
        %v1293 = vpop.f32.mrb[0].mxu0
        %1294 = vmatprep.mubr.bf16.mxu0 %v1205
        %1295 = vmatmul.mubr.bf16.gmra.mrb[0].mxu0 %v1204
        %v1296 = vpop.f32.mrb[0].mxu0
        %v1297 = vadd.f32 0.0, %v1296
        %v1298 = vpop.f32.mrb[0].mxu0
        %v1299 = vpop.f32.mrb[0].mxu0
        %v1300 = vadd.f32 0.0, %v1299
        %v1301 = vpop.f32.mrb[0].mxu0
        %1302 = vmatprep.mubr.bf16.mxu0 %v1207
        %1303 = vmatmul.mubr.bf16.gmra.mrb[0].mxu0 %v1206
        %v1304 = vpop.f32.mrb[0].mxu0
        %v1305 = vadd.f32 0.0, %v1304
        %v1306 = vpop.f32.mrb[0].mxu0
        %v1307 = vpop.f32.mrb[0].mxu0
        %v1308 = vadd.f32 0.0, %v1307
        %v1309 = vpop.f32.mrb[0].mxu0
        %1310 = vmatprep.mubr.bf16.mxu0 %v1209
        %1311 = vmatmul.mubr.bf16.gmra.mrb[0].mxu0 %v1208
        %v1312 = vpop.f32.mrb[0].mxu0
        %v1313 = vadd.f32 0.0, %v1312
        %v1314 = vpop.f32.mrb[0].mxu0
        %v1315 = vpop.f32.mrb[0].mxu0
        %v1316 = vadd.f32 0.0, %v1315
        %v1317 = vpop.f32.mrb[0].mxu0
        %1318 = vmatprep.mubr.bf16.mxu0 %v1211
        %1319 = vmatmul.mubr.bf16.gmra.mrb[0].mxu0 %v1210
        %v1320 = vpop.f32.mrb[0].mxu0
        %v1321 = vadd.f32 0.0, %v1320
        %v1322 = vpop.f32.mrb[0].mxu0
        %v1323 = vpop.f32.mrb[0].mxu0
        %v1324 = vadd.f32 0.0, %v1323
        %v1325 = vpop.f32.mrb[0].mxu0
        %1326 = vmatprep.mubr.bf16.mxu0 %v1213
        %1327 = vmatmul.mubr.bf16.gmra.mrb[0].mxu0 %v1212
        %v1328 = vpop.f32.mrb[0].mxu0
        %v1329 = vadd.f32 0.0, %v1328
        %v1330 = vpop.f32.mrb[0].mxu0
        %v1331 = vpop.f32.mrb[0].mxu0
        %v1332 = vadd.f32 0.0, %v1331
        %v1333 = vpop.f32.mrb[0].mxu0
        %1334 = vmatprep.mubr.bf16.mxu0 %v1215
        %1335 = vmatmul.mubr.bf16.gmra.mrb[0].mxu0 %v1214
        %v1336 = vpop.f32.mrb[0].mxu0
        %v1337 = vadd.f32 0.0, %v1336
        %v1338 = vpop.f32.mrb[0].mxu0
        %v1339 = vpop.f32.mrb[0].mxu0
        %v1340 = vadd.f32 0.0, %v1339
        %v1341 = vpop.f32.mrb[0].mxu0
        %1342 = vmatprep.mubr.bf16.mxu0 %v1217
        %1343 = vmatmul.mubr.bf16.gmra.mrb[0].mxu0 %v1216
        %v1344 = vpop.f32.mrb[0].mxu0
        %v1345 = vadd.f32 0.0, %v1344
        %v1346 = vpop.f32.mrb[0].mxu0
        %v1347 = vpop.f32.mrb[0].mxu0
        %v1348 = vadd.f32 0.0, %v1347
        %v1349 = vpop.f32.mrb[0].mxu0
        %1350 = vmatprep.mubr.bf16.mxu0 %v1219
        %1351 = vmatmul.mubr.bf16.gmra.mrb[0].mxu0 %v1218
        %v1352 = vpop.f32.mrb[0].mxu0
        %v1353 = vadd.f32 0.0, %v1352
        %v1354 = vpop.f32.mrb[0].mxu0
        %v1355 = vpop.f32.mrb[0].mxu0
        %v1356 = vadd.f32 0.0, %v1355
        %v1357 = vpop.f32.mrb[0].mxu0
        %1358 = vmatprep.mubr.bf16.mxu0 %v1221
        %1359 = vmatmul.mubr.bf16.gmra.mrb[0].mxu0 %v1220
        %v1360 = vpop.f32.mrb[0].mxu0
        %v1361 = vadd.f32 0.0, %v1360
        %v1362 = vpop.f32.mrb[0].mxu0
        %v1363 = vpop.f32.mrb[0].mxu0
        %v1364 = vadd.f32 0.0, %v1363
        %v1365 = vpop.f32.mrb[0].mxu0
        %1366 = vmatprep.mubr.bf16.mxu0 %v1223
        %1367 = vmatmul.mubr.bf16.gmra.mrb[0].mxu0 %v1222
        %v1368 = vpop.f32.mrb[0].mxu0
        %v1369 = vadd.f32 0.0, %v1368
        %v1370 = vpop.f32.mrb[0].mxu0
        %v1371 = vpop.f32.mrb[0].mxu0
        %v1372 = vadd.f32 0.0, %v1371
        %v1373 = vpop.f32.mrb[0].mxu0
        %1374 = vmatprep.mubr.bf16.mxu0 %v1225
        %1375 = vmatmul.mubr.bf16.gmra.mrb[0].mxu0 %v1224
        %v1376 = vpop.f32.mrb[0].mxu0
        %v1377 = vadd.f32 0.0, %v1376
        %v1378 = vpop.f32.mrb[0].mxu0
        %v1379 = vpop.f32.mrb[0].mxu0
        %v1380 = vadd.f32 0.0, %v1379
        %v1381 = vpop.f32.mrb[0].mxu0
        %1382 = vmatprep.mubr.bf16.mxu0 %v1227
        %1383 = vmatmul.mubr.bf16.gmra.mrb[0].mxu0 %v1226
        %v1384 = vpop.f32.mrb[0].mxu0
        %v1385 = vadd.f32 0.0, %v1384
        %v1386 = vpop.f32.mrb[0].mxu0
        %v1387 = vpop.f32.mrb[0].mxu0
        %v1388 = vadd.f32 0.0, %v1387
        %v1389 = vpop.f32.mrb[0].mxu0
        %1390 = vmatprep.mubr.bf16.mxu0 %v1229
        %1391 = vmatmul.mubr.bf16.gmra.mrb[0].mxu0 %v1228
        %v1392 = vpop.f32.mrb[0].mxu0
        %v1393 = vadd.f32 0.0, %v1392
        %v1394 = vpop.f32.mrb[0].mxu0
        %v1395 = vpop.f32.mrb[0].mxu0
        %v1396 = vadd.f32 0.0, %v1395
        %v1397 = vpop.f32.mrb[0].mxu0
        %1398 = vmatprep.mubr.bf16.mxu0 %v1231
        %1399 = vmatmul.mubr.bf16.gmra.mrb[0].mxu0 %v1230
        %v1400 = vpop.f32.mrb[0].mxu0
        %v1401 = vadd.f32 0.0, %v1400
        %v1402 = vpop.f32.mrb[0].mxu0
        %v1403 = vpop.f32.mrb[0].mxu0
        %v1404 = vadd.f32 0.0, %v1403
        %v1405 = vpop.f32.mrb[0].mxu0
        %1406 = vmatprep.mubr.bf16.mxu0 %v1233
        %1407 = vmatmul.mubr.bf16.gmra.mrb[0].mxu0 %v1232
        %v1408 = vpop.f32.mrb[0].mxu0
        %v1409 = vadd.f32 0.0, %v1408
        %v1410 = vpop.f32.mrb[0].mxu0
        %v1411 = vpop.f32.mrb[0].mxu0
        %v1412 = vadd.f32 0.0, %v1411
        %v1413 = vpop.f32.mrb[0].mxu0
        %1414 = vdwg.mxu0
        %v1415 = vadd.f32 %v1154, %v1289
        %v1416 = vadd.f32 %v1155, %v1292
        %v1417 = vadd.f32 %v1156, %v1297
        %v1418 = vadd.f32 %v1157, %v1300
        %v1419 = vadd.f32 %v1158, %v1305
        %v1420 = vadd.f32 %v1159, %v1308
        %v1421 = vadd.f32 %v1160, %v1313
        %v1422 = vadd.f32 %v1161, %v1316
        %v1423 = vadd.f32 %v1162, %v1321
        %v1424 = vadd.f32 %v1163, %v1324
        %v1425 = vadd.f32 %v1164, %v1329
        %v1426 = vadd.f32 %v1165, %v1332
        %v1427 = vadd.f32 %v1166, %v1337
        %v1428 = vadd.f32 %v1167, %v1340
        %v1429 = vadd.f32 %v1168, %v1345
        %v1430 = vadd.f32 %v1169, %v1348
        %v1431 = vadd.f32 %v1170, %v1353
        %v1432 = vadd.f32 %v1171, %v1356
        %v1433 = vadd.f32 %v1172, %v1361
        %v1434 = vadd.f32 %v1173, %v1364
        %v1435 = vadd.f32 %v1174, %v1369
        %v1436 = vadd.f32 %v1175, %v1372
        %v1437 = vadd.f32 %v1176, %v1377
        %v1438 = vadd.f32 %v1177, %v1380
        %v1439 = vadd.f32 %v1178, %v1385
        %v1440 = vadd.f32 %v1179, %v1388
        %v1441 = vadd.f32 %v1180, %v1393
        %v1442 = vadd.f32 %v1181, %v1396
        %v1443 = vadd.f32 %v1182, %v1401
        %v1444 = vadd.f32 %v1183, %v1404
        %v1445 = vadd.f32 %v1184, %v1409
        %v1446 = vadd.f32 %v1185, %v1412
        %1447 = vst [vmem:[#allocation4] sm:$0xff] %v1415
        %1448 = vst [vmem:[#allocation4 + $0x8] sm:$0xff] %v1416
        %1449 = vst [vmem:[#allocation4 + $0x10] sm:$0xff] %v1417
        %1450 = vst [vmem:[#allocation4 + $0x18] sm:$0xff] %v1418
        %1451 = vst [vmem:[#allocation4 + $0x20] sm:$0xff] %v1419
        %1452 = vst [vmem:[#allocation4 + $0x28] sm:$0xff] %v1420
        %1453 = vst [vmem:[#allocation4 + $0x30] sm:$0xff] %v1421
        %1454 = vst [vmem:[#allocation4 + $0x38] sm:$0xff] %v1422
        %1455 = vst [vmem:[#allocation4 + $0x40] sm:$0xff] %v1423
        %1456 = vst [vmem:[#allocation4 + $0x48] sm:$0xff] %v1424
        %1457 = vst [vmem:[#allocation4 + $0x50] sm:$0xff] %v1425
        %1458 = vst [vmem:[#allocation4 + $0x58] sm:$0xff] %v1426
        %1459 = vst [vmem:[#allocation4 + $0x60] sm:$0xff] %v1427
        %1460 = vst [vmem:[#allocation4 + $0x68] sm:$0xff] %v1428
        %1461 = vst [vmem:[#allocation4 + $0x70] sm:$0xff] %v1429
        %1462 = vst [vmem:[#allocation4 + $0x78] sm:$0xff] %v1430
        %1463 = vst [vmem:[#allocation4 + $0x80] sm:$0xff] %v1431
        %1464 = vst [vmem:[#allocation4 + $0x88] sm:$0xff] %v1432
        %1465 = vst [vmem:[#allocation4 + $0x90] sm:$0xff] %v1433
        %1466 = vst [vmem:[#allocation4 + $0x98] sm:$0xff] %v1434
        %1467 = vst [vmem:[#allocation4 + $0xa0] sm:$0xff] %v1435
        %1468 = vst [vmem:[#allocation4 + $0xa8] sm:$0xff] %v1436
        %1469 = vst [vmem:[#allocation4 + $0xb0] sm:$0xff] %v1437
        %1470 = vst [vmem:[#allocation4 + $0xb8] sm:$0xff] %v1438
        %1471 = vst [vmem:[#allocation4 + $0xc0] sm:$0xff] %v1439
        %1472 = vst [vmem:[#allocation4 + $0xc8] sm:$0xff] %v1440
        %1473 = vst [vmem:[#allocation4 + $0xd0] sm:$0xff] %v1441
        %1474 = vst [vmem:[#allocation4 + $0xd8] sm:$0xff] %v1442
        %1475 = vst [vmem:[#allocation4 + $0xe0] sm:$0xff] %v1443
        %1476 = vst [vmem:[#allocation4 + $0xe8] sm:$0xff] %v1444
        %1477 = vst [vmem:[#allocation4 + $0xf0] sm:$0xff] %v1445
        %1478 = vst [vmem:[#allocation4 + $0xf8] sm:$0xff] %v1446
        %p1479 = scmp.eq.s32.totalorder %s32, 1
        // Predicated region
        $region84: #{tpu_custom_call.1} parent=58 // pred_check
          %p1480 = pneg %p1479
        $region85: #{tpu_custom_call.1} parent=58 // pred_check_branch
          %1482 = sbr.rel (%p1480) target = $region87
        $region86: #{tpu_custom_call.1} parent=58 // pred_region
          %v1483 = vld [vmem:[#allocation4] sm:$0xff]
          %v1484 = vld [vmem:[#allocation4 + $0x8] sm:$0xff]
          %v1485 = vld [vmem:[#allocation4 + $0x10] sm:$0xff]
          %v1486 = vld [vmem:[#allocation4 + $0x18] sm:$0xff]
          %v1487 = vld [vmem:[#allocation4 + $0x20] sm:$0xff]
          %v1488 = vld [vmem:[#allocation4 + $0x28] sm:$0xff]
          %v1489 = vld [vmem:[#allocation4 + $0x30] sm:$0xff]
          %v1490 = vld [vmem:[#allocation4 + $0x38] sm:$0xff]
          %v1491 = vld [vmem:[#allocation4 + $0x40] sm:$0xff]
          %v1492 = vld [vmem:[#allocation4 + $0x48] sm:$0xff]
          %v1493 = vld [vmem:[#allocation4 + $0x50] sm:$0xff]
          %v1494 = vld [vmem:[#allocation4 + $0x58] sm:$0xff]
          %v1495 = vld [vmem:[#allocation4 + $0x60] sm:$0xff]
          %v1496 = vld [vmem:[#allocation4 + $0x68] sm:$0xff]
          %v1497 = vld [vmem:[#allocation4 + $0x70] sm:$0xff]
          %v1498 = vld [vmem:[#allocation4 + $0x78] sm:$0xff]
          %v1499 = vld [vmem:[#allocation4 + $0x80] sm:$0xff]
          %v1500 = vld [vmem:[#allocation4 + $0x88] sm:$0xff]
          %v1501 = vld [vmem:[#allocation4 + $0x90] sm:$0xff]
          %v1502 = vld [vmem:[#allocation4 + $0x98] sm:$0xff]
          %v1503 = vld [vmem:[#allocation4 + $0xa0] sm:$0xff]
          %v1504 = vld [vmem:[#allocation4 + $0xa8] sm:$0xff]
          %v1505 = vld [vmem:[#allocation4 + $0xb0] sm:$0xff]
          %v1506 = vld [vmem:[#allocation4 + $0xb8] sm:$0xff]
          %v1507 = vld [vmem:[#allocation4 + $0xc0] sm:$0xff]
          %v1508 = vld [vmem:[#allocation4 + $0xc8] sm:$0xff]
          %v1509 = vld [vmem:[#allocation4 + $0xd0] sm:$0xff]
          %v1510 = vld [vmem:[#allocation4 + $0xd8] sm:$0xff]
          %v1511 = vld [vmem:[#allocation4 + $0xe0] sm:$0xff]
          %v1512 = vld [vmem:[#allocation4 + $0xe8] sm:$0xff]
          %v1513 = vld [vmem:[#allocation4 + $0xf0] sm:$0xff]
          %v1514 = vld [vmem:[#allocation4 + $0xf8] sm:$0xff]
          %v1515 = vld [vmem:[%s425] sm:$0xff]
          %v1516 = vld [vmem:[%s425 + $0x8] sm:$0xff]
          %v1517 = vld [vmem:[%s425 + $0x10] sm:$0xff]
          %v1518 = vld [vmem:[%s425 + $0x18] sm:$0xff]
          %v1519 = vld [vmem:[%s425 + $0x20] sm:$0xff]
          %v1520 = vld [vmem:[%s425 + $0x28] sm:$0xff]
          %v1521 = vld [vmem:[%s425 + $0x30] sm:$0xff]
          %v1522 = vld [vmem:[%s425 + $0x38] sm:$0xff]
          %v1523 = vld [vmem:[%s425 + $0x40] sm:$0xff]
          %v1524 = vld [vmem:[%s425 + $0x48] sm:$0xff]
          %v1525 = vld [vmem:[%s425 + $0x50] sm:$0xff]
          %v1526 = vld [vmem:[%s425 + $0x58] sm:$0xff]
          %v1527 = vld [vmem:[%s425 + $0x60] sm:$0xff]
          %v1528 = vld [vmem:[%s425 + $0x68] sm:$0xff]
          %v1529 = vld [vmem:[%s425 + $0x70] sm:$0xff]
          %v1530 = vld [vmem:[%s425 + $0x78] sm:$0xff]
          %v1531 = vld [vmem:[%s425 + $0x80] sm:$0xff]
          %v1532 = vld [vmem:[%s425 + $0x88] sm:$0xff]
          %v1533 = vld [vmem:[%s425 + $0x90] sm:$0xff]
          %v1534 = vld [vmem:[%s425 + $0x98] sm:$0xff]
          %v1535 = vld [vmem:[%s425 + $0xa0] sm:$0xff]
          %v1536 = vld [vmem:[%s425 + $0xa8] sm:$0xff]
          %v1537 = vld [vmem:[%s425 + $0xb0] sm:$0xff]
          %v1538 = vld [vmem:[%s425 + $0xb8] sm:$0xff]
          %v1539 = vld [vmem:[%s425 + $0xc0] sm:$0xff]
          %v1540 = vld [vmem:[%s425 + $0xc8] sm:$0xff]
          %v1541 = vld [vmem:[%s425 + $0xd0] sm:$0xff]
          %v1542 = vld [vmem:[%s425 + $0xd8] sm:$0xff]
          %v1543 = vld [vmem:[%s425 + $0xe0] sm:$0xff]
          %v1544 = vld [vmem:[%s425 + $0xe8] sm:$0xff]
          %v1545 = vld [vmem:[%s425 + $0xf0] sm:$0xff]
          %v1546 = vld [vmem:[%s425 + $0xf8] sm:$0xff]
          %1548 = vset.pattern.permute.xlu0 0
          %1549 = vperm.xlu0 %1548, %v1515
          %v1550 = vpop.permute.xlu0 %1549
          %1553 = vset.pattern.permute.xlu0 0
          %1554 = vperm.xlu0 %1553, %v1516
          %v1555 = vpop.permute.xlu0 %1554
          %1558 = vset.pattern.permute.xlu0 0
          %1559 = vperm.xlu0 %1558, %v1517
          %v1560 = vpop.permute.xlu0 %1559
          %1563 = vset.pattern.permute.xlu0 0
          %1564 = vperm.xlu0 %1563, %v1518
          %v1565 = vpop.permute.xlu0 %1564
          %1568 = vset.pattern.permute.xlu0 0
          %1569 = vperm.xlu0 %1568, %v1519
          %v1570 = vpop.permute.xlu0 %1569
          %1573 = vset.pattern.permute.xlu0 0
          %1574 = vperm.xlu0 %1573, %v1520
          %v1575 = vpop.permute.xlu0 %1574
          %1578 = vset.pattern.permute.xlu0 0
          %1579 = vperm.xlu0 %1578, %v1521
          %v1580 = vpop.permute.xlu0 %1579
          %1583 = vset.pattern.permute.xlu0 0
          %1584 = vperm.xlu0 %1583, %v1522
          %v1585 = vpop.permute.xlu0 %1584
          %1588 = vset.pattern.permute.xlu0 0
          %1589 = vperm.xlu0 %1588, %v1523
          %v1590 = vpop.permute.xlu0 %1589
          %1593 = vset.pattern.permute.xlu0 0
          %1594 = vperm.xlu0 %1593, %v1524
          %v1595 = vpop.permute.xlu0 %1594
          %1598 = vset.pattern.permute.xlu0 0
          %1599 = vperm.xlu0 %1598, %v1525
          %v1600 = vpop.permute.xlu0 %1599
          %1603 = vset.pattern.permute.xlu0 0
          %1604 = vperm.xlu0 %1603, %v1526
          %v1605 = vpop.permute.xlu0 %1604
          %1608 = vset.pattern.permute.xlu0 0
          %1609 = vperm.xlu0 %1608, %v1527
          %v1610 = vpop.permute.xlu0 %1609
          %1613 = vset.pattern.permute.xlu0 0
          %1614 = vperm.xlu0 %1613, %v1528
          %v1615 = vpop.permute.xlu0 %1614
          %1618 = vset.pattern.permute.xlu0 0
          %1619 = vperm.xlu0 %1618, %v1529
          %v1620 = vpop.permute.xlu0 %1619
          %1623 = vset.pattern.permute.xlu0 0
          %1624 = vperm.xlu0 %1623, %v1530
          %v1625 = vpop.permute.xlu0 %1624
          %1628 = vset.pattern.permute.xlu0 0
          %1629 = vperm.xlu0 %1628, %v1531
          %v1630 = vpop.permute.xlu0 %1629
          %1633 = vset.pattern.permute.xlu0 0
          %1634 = vperm.xlu0 %1633, %v1532
          %v1635 = vpop.permute.xlu0 %1634
          %1638 = vset.pattern.permute.xlu0 0
          %1639 = vperm.xlu0 %1638, %v1533
          %v1640 = vpop.permute.xlu0 %1639
          %1643 = vset.pattern.permute.xlu0 0
          %1644 = vperm.xlu0 %1643, %v1534
          %v1645 = vpop.permute.xlu0 %1644
          %1648 = vset.pattern.permute.xlu0 0
          %1649 = vperm.xlu0 %1648, %v1535
          %v1650 = vpop.permute.xlu0 %1649
          %1653 = vset.pattern.permute.xlu0 0
          %1654 = vperm.xlu0 %1653, %v1536
          %v1655 = vpop.permute.xlu0 %1654
          %1658 = vset.pattern.permute.xlu0 0
          %1659 = vperm.xlu0 %1658, %v1537
          %v1660 = vpop.permute.xlu0 %1659
          %1663 = vset.pattern.permute.xlu0 0
          %1664 = vperm.xlu0 %1663, %v1538
          %v1665 = vpop.permute.xlu0 %1664
          %1668 = vset.pattern.permute.xlu0 0
          %1669 = vperm.xlu0 %1668, %v1539
          %v1670 = vpop.permute.xlu0 %1669
          %1673 = vset.pattern.permute.xlu0 0
          %1674 = vperm.xlu0 %1673, %v1540
          %v1675 = vpop.permute.xlu0 %1674
          %1678 = vset.pattern.permute.xlu0 0
          %1679 = vperm.xlu0 %1678, %v1541
          %v1680 = vpop.permute.xlu0 %1679
          %1683 = vset.pattern.permute.xlu0 0
          %1684 = vperm.xlu0 %1683, %v1542
          %v1685 = vpop.permute.xlu0 %1684
          %1688 = vset.pattern.permute.xlu0 0
          %1689 = vperm.xlu0 %1688, %v1543
          %v1690 = vpop.permute.xlu0 %1689
          %1693 = vset.pattern.permute.xlu0 0
          %1694 = vperm.xlu0 %1693, %v1544
          %v1695 = vpop.permute.xlu0 %1694
          %1698 = vset.pattern.permute.xlu0 0
          %1699 = vperm.xlu0 %1698, %v1545
          %v1700 = vpop.permute.xlu0 %1699
          %1703 = vset.pattern.permute.xlu0 0
          %1704 = vperm.xlu0 %1703, %v1546
          %v1705 = vpop.permute.xlu0 %1704
          %v1707 = vmul.f32 %v1483, %v1550
          %v1708 = vmul.f32 %v1484, %v1555
          %v1709 = vmul.f32 %v1485, %v1560
          %v1710 = vmul.f32 %v1486, %v1565
          %v1711 = vmul.f32 %v1487, %v1570
          %v1712 = vmul.f32 %v1488, %v1575
          %v1713 = vmul.f32 %v1489, %v1580
          %v1714 = vmul.f32 %v1490, %v1585
          %v1715 = vmul.f32 %v1491, %v1590
          %v1716 = vmul.f32 %v1492, %v1595
          %v1717 = vmul.f32 %v1493, %v1600
          %v1718 = vmul.f32 %v1494, %v1605
          %v1719 = vmul.f32 %v1495, %v1610
          %v1720 = vmul.f32 %v1496, %v1615
          %v1721 = vmul.f32 %v1497, %v1620
          %v1722 = vmul.f32 %v1498, %v1625
          %v1723 = vmul.f32 %v1499, %v1630
          %v1724 = vmul.f32 %v1500, %v1635
          %v1725 = vmul.f32 %v1501, %v1640
          %v1726 = vmul.f32 %v1502, %v1645
          %v1727 = vmul.f32 %v1503, %v1650
          %v1728 = vmul.f32 %v1504, %v1655
          %v1729 = vmul.f32 %v1505, %v1660
          %v1730 = vmul.f32 %v1506, %v1665
          %v1731 = vmul.f32 %v1507, %v1670
          %v1732 = vmul.f32 %v1508, %v1675
          %v1733 = vmul.f32 %v1509, %v1680
          %v1734 = vmul.f32 %v1510, %v1685
          %v1735 = vmul.f32 %v1511, %v1690
          %v1736 = vmul.f32 %v1512, %v1695
          %v1737 = vmul.f32 %v1513, %v1700
          %v1738 = vmul.f32 %v1514, %v1705
          %v1739 = vld [vmem:[%s435] sm:$0x1]
          %v1741 = vlaneseq
          %v1742 = vshrl.u32 %v1741, 7
          %v1743 = vsub.s32 0, %v1742
          %v1744 = vrot.slane %v1739, %v1743
          %v1746 = vadd.f32 %v1707, %v1744
          %v1747 = vadd.f32 %v1708, %v1744
          %v1748 = vadd.f32 %v1709, %v1744
          %v1749 = vadd.f32 %v1710, %v1744
          %v1750 = vadd.f32 %v1711, %v1744
          %v1751 = vadd.f32 %v1712, %v1744
          %v1752 = vadd.f32 %v1713, %v1744
          %v1753 = vadd.f32 %v1714, %v1744
          %v1754 = vadd.f32 %v1715, %v1744
          %v1755 = vadd.f32 %v1716, %v1744
          %v1756 = vadd.f32 %v1717, %v1744
          %v1757 = vadd.f32 %v1718, %v1744
          %v1758 = vadd.f32 %v1719, %v1744
          %v1759 = vadd.f32 %v1720, %v1744
          %v1760 = vadd.f32 %v1721, %v1744
          %v1761 = vadd.f32 %v1722, %v1744
          %v1762 = vadd.f32 %v1723, %v1744
          %v1763 = vadd.f32 %v1724, %v1744
          %v1764 = vadd.f32 %v1725, %v1744
          %v1765 = vadd.f32 %v1726, %v1744
          %v1766 = vadd.f32 %v1727, %v1744
          %v1767 = vadd.f32 %v1728, %v1744
          %v1768 = vadd.f32 %v1729, %v1744
          %v1769 = vadd.f32 %v1730, %v1744
          %v1770 = vadd.f32 %v1731, %v1744
          %v1771 = vadd.f32 %v1732, %v1744
          %v1772 = vadd.f32 %v1733, %v1744
          %v1773 = vadd.f32 %v1734, %v1744
          %v1774 = vadd.f32 %v1735, %v1744
          %v1775 = vadd.f32 %v1736, %v1744
          %v1776 = vadd.f32 %v1737, %v1744
          %v1777 = vadd.f32 %v1738, %v1744
          %p1778 = scmp.eq.s32.totalorder %s30, 2
          %vm1779 = vcmp.gt.f32.partialorder %v1746, 0.0
          %vm1780 = vcmp.gt.f32.partialorder %v1747, 0.0
          %vm1781 = vcmp.gt.f32.partialorder %v1748, 0.0
          %vm1782 = vcmp.gt.f32.partialorder %v1749, 0.0
          %vm1783 = vcmp.gt.f32.partialorder %v1750, 0.0
          %vm1784 = vcmp.gt.f32.partialorder %v1751, 0.0
          %vm1785 = vcmp.gt.f32.partialorder %v1752, 0.0
          %vm1786 = vcmp.gt.f32.partialorder %v1753, 0.0
          %vm1787 = vcmp.gt.f32.partialorder %v1754, 0.0
          %vm1788 = vcmp.gt.f32.partialorder %v1755, 0.0
          %vm1789 = vcmp.gt.f32.partialorder %v1756, 0.0
          %vm1790 = vcmp.gt.f32.partialorder %v1757, 0.0
          %vm1791 = vcmp.gt.f32.partialorder %v1758, 0.0
          %vm1792 = vcmp.gt.f32.partialorder %v1759, 0.0
          %vm1793 = vcmp.gt.f32.partialorder %v1760, 0.0
          %vm1794 = vcmp.gt.f32.partialorder %v1761, 0.0
          %vm1795 = vcmp.gt.f32.partialorder %v1762, 0.0
          %vm1796 = vcmp.gt.f32.partialorder %v1763, 0.0
          %vm1797 = vcmp.gt.f32.partialorder %v1764, 0.0
          %vm1798 = vcmp.gt.f32.partialorder %v1765, 0.0
          %vm1799 = vcmp.gt.f32.partialorder %v1766, 0.0
          %vm1800 = vcmp.gt.f32.partialorder %v1767, 0.0
          %vm1801 = vcmp.gt.f32.partialorder %v1768, 0.0
          %vm1802 = vcmp.gt.f32.partialorder %v1769, 0.0
          %vm1803 = vcmp.gt.f32.partialorder %v1770, 0.0
          %vm1804 = vcmp.gt.f32.partialorder %v1771, 0.0
          %vm1805 = vcmp.gt.f32.partialorder %v1772, 0.0
          %vm1806 = vcmp.gt.f32.partialorder %v1773, 0.0
          %vm1807 = vcmp.gt.f32.partialorder %v1774, 0.0
          %vm1808 = vcmp.gt.f32.partialorder %v1775, 0.0
          %vm1809 = vcmp.gt.f32.partialorder %v1776, 0.0
          %vm1810 = vcmp.gt.f32.partialorder %v1777, 0.0
          %s1811 = scalar_select %p1778, 1, 0
          %v1812 = vstv %s1811
          %vm1813 = vcmp.eq.s32.totalorder %v1812, 1
          %vm1814 = vmor %vm1779, %vm1813
          %vm1815 = vmor %vm1780, %vm1813
          %vm1816 = vmor %vm1781, %vm1813
          %vm1817 = vmor %vm1782, %vm1813
          %vm1818 = vmor %vm1783, %vm1813
          %vm1819 = vmor %vm1784, %vm1813
          %vm1820 = vmor %vm1785, %vm1813
          %vm1821 = vmor %vm1786, %vm1813
          %vm1822 = vmor %vm1787, %vm1813
          %vm1823 = vmor %vm1788, %vm1813
          %vm1824 = vmor %vm1789, %vm1813
          %vm1825 = vmor %vm1790, %vm1813
          %vm1826 = vmor %vm1791, %vm1813
          %vm1827 = vmor %vm1792, %vm1813
          %vm1828 = vmor %vm1793, %vm1813
          %vm1829 = vmor %vm1794, %vm1813
          %vm1830 = vmor %vm1795, %vm1813
          %vm1831 = vmor %vm1796, %vm1813
          %vm1832 = vmor %vm1797, %vm1813
          %vm1833 = vmor %vm1798, %vm1813
          %vm1834 = vmor %vm1799, %vm1813
          %vm1835 = vmor %vm1800, %vm1813
          %vm1836 = vmor %vm1801, %vm1813
          %vm1837 = vmor %vm1802, %vm1813
          %vm1838 = vmor %vm1803, %vm1813
          %vm1839 = vmor %vm1804, %vm1813
          %vm1840 = vmor %vm1805, %vm1813
          %vm1841 = vmor %vm1806, %vm1813
          %vm1842 = vmor %vm1807, %vm1813
          %vm1843 = vmor %vm1808, %vm1813
          %vm1844 = vmor %vm1809, %vm1813
          %vm1845 = vmor %vm1810, %vm1813
          %v1846 = vsel %vm1814, %v1746, 0.0
          %v1847 = vsel %vm1815, %v1747, 0.0
          %v1848 = vsel %vm1816, %v1748, 0.0
          %v1849 = vsel %vm1817, %v1749, 0.0
          %v1850 = vsel %vm1818, %v1750, 0.0
          %v1851 = vsel %vm1819, %v1751, 0.0
          %v1852 = vsel %vm1820, %v1752, 0.0
          %v1853 = vsel %vm1821, %v1753, 0.0
          %v1854 = vsel %vm1822, %v1754, 0.0
          %v1855 = vsel %vm1823, %v1755, 0.0
          %v1856 = vsel %vm1824, %v1756, 0.0
          %v1857 = vsel %vm1825, %v1757, 0.0
          %v1858 = vsel %vm1826, %v1758, 0.0
          %v1859 = vsel %vm1827, %v1759, 0.0
          %v1860 = vsel %vm1828, %v1760, 0.0
          %v1861 = vsel %vm1829, %v1761, 0.0
          %v1862 = vsel %vm1830, %v1762, 0.0
          %v1863 = vsel %vm1831, %v1763, 0.0
          %v1864 = vsel %vm1832, %v1764, 0.0
          %v1865 = vsel %vm1833, %v1765, 0.0
          %v1866 = vsel %vm1834, %v1766, 0.0
          %v1867 = vsel %vm1835, %v1767, 0.0
          %v1868 = vsel %vm1836, %v1768, 0.0
          %v1869 = vsel %vm1837, %v1769, 0.0
          %v1870 = vsel %vm1838, %v1770, 0.0
          %v1871 = vsel %vm1839, %v1771, 0.0
          %v1872 = vsel %vm1840, %v1772, 0.0
          %v1873 = vsel %vm1841, %v1773, 0.0
          %v1874 = vsel %vm1842, %v1774, 0.0
          %v1875 = vsel %vm1843, %v1775, 0.0
          %v1876 = vsel %vm1844, %v1776, 0.0
          %v1877 = vsel %vm1845, %v1777, 0.0
          %v1878 = vlaneseq
          %v1879 = vshrl.u32 %v1878, 7
          %v1880 = vadd.s32 %v1879, 8
          %v1881 = vadd.s32 %v1879, 16
          %v1882 = vadd.s32 %v1879, 24
          %v1883 = vadd.s32 %v1879, 32
          %v1884 = vadd.s32 %v1879, 40
          %v1885 = vadd.s32 %v1879, 48
          %v1886 = vadd.s32 %v1879, 56
          %v1887 = vadd.s32 %v1879, 64
          %v1888 = vadd.s32 %v1879, 72
          %v1889 = vadd.s32 %v1879, 80
          %v1890 = vadd.s32 %v1879, 88
          %v1891 = vadd.s32 %v1879, 96
          %v1892 = vadd.s32 %v1879, 104
          %v1893 = vadd.s32 %v1879, 112
          %v1894 = vadd.s32 %v1879, 120
          %v1895 = vadd.s32 %v1879, 128
          %v1896 = vadd.s32 %v1879, 136
          %v1897 = vadd.s32 %v1879, 144
          %v1898 = vadd.s32 %v1879, 152
          %v1899 = vadd.s32 %v1879, 160
          %v1900 = vadd.s32 %v1879, 168
          %v1901 = vadd.s32 %v1879, 176
          %v1902 = vadd.s32 %v1879, 184
          %v1903 = vadd.s32 %v1879, 192
          %v1904 = vadd.s32 %v1879, 200
          %v1905 = vadd.s32 %v1879, 208
          %v1906 = vadd.s32 %v1879, 216
          %v1907 = vadd.s32 %v1879, 224
          %v1908 = vadd.s32 %v1879, 232
          %v1909 = vadd.s32 %v1879, 240
          %v1910 = vadd.s32 %v1879, 248
          %s1911 = smul.u32 %s31, 256
          %v1912 = vstv %s1911
          %v1913 = vadd.s32 %v1879, %v1912
          %v1914 = vadd.s32 %v1880, %v1912
          %v1915 = vadd.s32 %v1881, %v1912
          %v1916 = vadd.s32 %v1882, %v1912
          %v1917 = vadd.s32 %v1883, %v1912
          %v1918 = vadd.s32 %v1884, %v1912
          %v1919 = vadd.s32 %v1885, %v1912
          %v1920 = vadd.s32 %v1886, %v1912
          %v1921 = vadd.s32 %v1887, %v1912
          %v1922 = vadd.s32 %v1888, %v1912
          %v1923 = vadd.s32 %v1889, %v1912
          %v1924 = vadd.s32 %v1890, %v1912
          %v1925 = vadd.s32 %v1891, %v1912
          %v1926 = vadd.s32 %v1892, %v1912
          %v1927 = vadd.s32 %v1893, %v1912
          %v1928 = vadd.s32 %v1894, %v1912
          %v1929 = vadd.s32 %v1895, %v1912
          %v1930 = vadd.s32 %v1896, %v1912
          %v1931 = vadd.s32 %v1897, %v1912
          %v1932 = vadd.s32 %v1898, %v1912
          %v1933 = vadd.s32 %v1899, %v1912
          %v1934 = vadd.s32 %v1900, %v1912
          %v1935 = vadd.s32 %v1901, %v1912
          %v1936 = vadd.s32 %v1902, %v1912
          %v1937 = vadd.s32 %v1903, %v1912
          %v1938 = vadd.s32 %v1904, %v1912
          %v1939 = vadd.s32 %v1905, %v1912
          %v1940 = vadd.s32 %v1906, %v1912
          %v1941 = vadd.s32 %v1907, %v1912
          %v1942 = vadd.s32 %v1908, %v1912
          %v1943 = vadd.s32 %v1909, %v1912
          %v1944 = vadd.s32 %v1910, %v1912
          %vm1945 = vcmp.lt.s32.totalorder %v1913, 300
          %vm1946 = vcmp.lt.s32.totalorder %v1914, 300
          %vm1947 = vcmp.lt.s32.totalorder %v1915, 300
          %vm1948 = vcmp.lt.s32.totalorder %v1916, 300
          %vm1949 = vcmp.lt.s32.totalorder %v1917, 300
          %vm1950 = vcmp.lt.s32.totalorder %v1918, 300
          %vm1951 = vcmp.lt.s32.totalorder %v1919, 300
          %vm1952 = vcmp.lt.s32.totalorder %v1920, 300
          %vm1953 = vcmp.lt.s32.totalorder %v1921, 300
          %vm1954 = vcmp.lt.s32.totalorder %v1922, 300
          %vm1955 = vcmp.lt.s32.totalorder %v1923, 300
          %vm1956 = vcmp.lt.s32.totalorder %v1924, 300
          %vm1957 = vcmp.lt.s32.totalorder %v1925, 300
          %vm1958 = vcmp.lt.s32.totalorder %v1926, 300
          %vm1959 = vcmp.lt.s32.totalorder %v1927, 300
          %vm1960 = vcmp.lt.s32.totalorder %v1928, 300
          %vm1961 = vcmp.lt.s32.totalorder %v1929, 300
          %vm1962 = vcmp.lt.s32.totalorder %v1930, 300
          %vm1963 = vcmp.lt.s32.totalorder %v1931, 300
          %vm1964 = vcmp.lt.s32.totalorder %v1932, 300
          %vm1965 = vcmp.lt.s32.totalorder %v1933, 300
          %vm1966 = vcmp.lt.s32.totalorder %v1934, 300
          %vm1967 = vcmp.lt.s32.totalorder %v1935, 300
          %vm1968 = vcmp.lt.s32.totalorder %v1936, 300
          %vm1969 = vcmp.lt.s32.totalorder %v1937, 300
          %vm1970 = vcmp.lt.s32.totalorder %v1938, 300
          %vm1971 = vcmp.lt.s32.totalorder %v1939, 300
          %vm1972 = vcmp.lt.s32.totalorder %v1940, 300
          %vm1973 = vcmp.lt.s32.totalorder %v1941, 300
          %vm1974 = vcmp.lt.s32.totalorder %v1942, 300
          %vm1975 = vcmp.lt.s32.totalorder %v1943, 300
          %vm1976 = vcmp.lt.s32.totalorder %v1944, 300
          %v1977 = vsel %vm1945, %v1846, 0.0
          %v1978 = vsel %vm1946, %v1847, 0.0
          %v1979 = vsel %vm1947, %v1848, 0.0
          %v1980 = vsel %vm1948, %v1849, 0.0
          %v1981 = vsel %vm1949, %v1850, 0.0
          %v1982 = vsel %vm1950, %v1851, 0.0
          %v1983 = vsel %vm1951, %v1852, 0.0
          %v1984 = vsel %vm1952, %v1853, 0.0
          %v1985 = vsel %vm1953, %v1854, 0.0
          %v1986 = vsel %vm1954, %v1855, 0.0
          %v1987 = vsel %vm1955, %v1856, 0.0
          %v1988 = vsel %vm1956, %v1857, 0.0
          %v1989 = vsel %vm1957, %v1858, 0.0
          %v1990 = vsel %vm1958, %v1859, 0.0
          %v1991 = vsel %vm1959, %v1860, 0.0
          %v1992 = vsel %vm1960, %v1861, 0.0
          %v1993 = vsel %vm1961, %v1862, 0.0
          %v1994 = vsel %vm1962, %v1863, 0.0
          %v1995 = vsel %vm1963, %v1864, 0.0
          %v1996 = vsel %vm1964, %v1865, 0.0
          %v1997 = vsel %vm1965, %v1866, 0.0
          %v1998 = vsel %vm1966, %v1867, 0.0
          %v1999 = vsel %vm1967, %v1868, 0.0
          %v2000 = vsel %vm1968, %v1869, 0.0
          %v2001 = vsel %vm1969, %v1870, 0.0
          %v2002 = vsel %vm1970, %v1871, 0.0
          %v2003 = vsel %vm1971, %v1872, 0.0
          %v2004 = vsel %vm1972, %v1873, 0.0
          %v2005 = vsel %vm1973, %v1874, 0.0
          %v2006 = vsel %vm1974, %v1875, 0.0
          %v2007 = vsel %vm1975, %v1876, 0.0
          %v2008 = vsel %vm1976, %v1877, 0.0
          %v2009 = vpack.c.bf16 %v1978, %v1977
          %v2010 = vpack.c.bf16 %v1980, %v1979
          %v2011 = vpack.c.bf16 %v1982, %v1981
          %v2012 = vpack.c.bf16 %v1984, %v1983
          %v2013 = vpack.c.bf16 %v1986, %v1985
          %v2014 = vpack.c.bf16 %v1988, %v1987
          %v2015 = vpack.c.bf16 %v1990, %v1989
          %v2016 = vpack.c.bf16 %v1992, %v1991
          %v2017 = vpack.c.bf16 %v1994, %v1993
          %v2018 = vpack.c.bf16 %v1996, %v1995
          %v2019 = vpack.c.bf16 %v1998, %v1997
          %v2020 = vpack.c.bf16 %v2000, %v1999
          %v2021 = vpack.c.bf16 %v2002, %v2001
          %v2022 = vpack.c.bf16 %v2004, %v2003
          %v2023 = vpack.c.bf16 %v2006, %v2005
          %v2024 = vpack.c.bf16 %v2008, %v2007
          %s2025 = sshra.s32 %s1911, 4
          %s2026 = sand.u32 %s1911, 15
          %s2027 = smul.addr %s2025, 8
          %s2028 = scalar_lea.vmem [#allocation2], %s2027
          %2029 = vst [vmem:[%s2028] sm:$0xff] %v2009
          %2030 = vst [vmem:[%s2028 + $0x8] sm:$0xff] %v2010
          %2031 = vst [vmem:[%s2028 + $0x10] sm:$0xff] %v2011
          %2032 = vst [vmem:[%s2028 + $0x18] sm:$0xff] %v2012
          %2033 = vst [vmem:[%s2028 + $0x20] sm:$0xff] %v2013
          %2034 = vst [vmem:[%s2028 + $0x28] sm:$0xff] %v2014
          %2035 = vst [vmem:[%s2028 + $0x30] sm:$0xff] %v2015
          %2036 = vst [vmem:[%s2028 + $0x38] sm:$0xff] %v2016
          %2037 = vst [vmem:[%s2028 + $0x40] sm:$0xff] %v2017
          %2038 = vst [vmem:[%s2028 + $0x48] sm:$0xff] %v2018
          %2039 = vst [vmem:[%s2028 + $0x50] sm:$0xff] %v2019
          %2040 = vst [vmem:[%s2028 + $0x58] sm:$0xff] %v2020
          %2041 = vst [vmem:[%s2028 + $0x60] sm:$0xff] %v2021
          %2042 = vst [vmem:[%s2028 + $0x68] sm:$0xff] %v2022
          %2043 = vst [vmem:[%s2028 + $0x70] sm:$0xff] %v2023
          %2044 = vst [vmem:[%s2028 + $0x78] sm:$0xff] %v2024
          %v2061 = vunpack.c.l.b16 %v2009
          %v2062 = vunpack.c.h.b16 %v2009
          %v2063 = vunpack.c.l.b16 %v2010
          %v2064 = vunpack.c.h.b16 %v2010
          %v2065 = vunpack.c.l.b16 %v2011
          %v2066 = vunpack.c.h.b16 %v2011
          %v2067 = vunpack.c.l.b16 %v2012
          %v2068 = vunpack.c.h.b16 %v2012
          %v2069 = vunpack.c.l.b16 %v2013
          %v2070 = vunpack.c.h.b16 %v2013
          %v2071 = vunpack.c.l.b16 %v2014
          %v2072 = vunpack.c.h.b16 %v2014
          %v2073 = vunpack.c.l.b16 %v2015
          %v2074 = vunpack.c.h.b16 %v2015
          %v2075 = vunpack.c.l.b16 %v2016
          %v2076 = vunpack.c.h.b16 %v2016
          %v2077 = vunpack.c.l.b16 %v2017
          %v2078 = vunpack.c.h.b16 %v2017
          %v2079 = vunpack.c.l.b16 %v2018
          %v2080 = vunpack.c.h.b16 %v2018
          %v2081 = vunpack.c.l.b16 %v2019
          %v2082 = vunpack.c.h.b16 %v2019
          %v2083 = vunpack.c.l.b16 %v2020
          %v2084 = vunpack.c.h.b16 %v2020
          %v2085 = vunpack.c.l.b16 %v2021
          %v2086 = vunpack.c.h.b16 %v2021
          %v2087 = vunpack.c.l.b16 %v2022
          %v2088 = vunpack.c.h.b16 %v2022
          %v2089 = vunpack.c.l.b16 %v2023
          %v2090 = vunpack.c.h.b16 %v2023
          %v2091 = vunpack.c.l.b16 %v2024
          %v2092 = vunpack.c.h.b16 %v2024
          %v2093 = vpack.c.b16 %v2061, %v2061
          %v2094 = vpack.c.b16 %v2062, %v2062
          %v2095 = vpack.c.b16 %v2063, %v2063
          %v2096 = vpack.c.b16 %v2064, %v2064
          %v2097 = vpack.c.b16 %v2065, %v2065
          %v2098 = vpack.c.b16 %v2066, %v2066
          %v2099 = vpack.c.b16 %v2067, %v2067
          %v2100 = vpack.c.b16 %v2068, %v2068
          %v2101 = vpack.c.b16 %v2069, %v2069
          %v2102 = vpack.c.b16 %v2070, %v2070
          %v2103 = vpack.c.b16 %v2071, %v2071
          %v2104 = vpack.c.b16 %v2072, %v2072
          %v2105 = vpack.c.b16 %v2073, %v2073
          %v2106 = vpack.c.b16 %v2074, %v2074
          %v2107 = vpack.c.b16 %v2075, %v2075
          %v2108 = vpack.c.b16 %v2076, %v2076
          %v2109 = vpack.c.b16 %v2077, %v2077
          %v2110 = vpack.c.b16 %v2078, %v2078
          %v2111 = vpack.c.b16 %v2079, %v2079
          %v2112 = vpack.c.b16 %v2080, %v2080
          %v2113 = vpack.c.b16 %v2081, %v2081
          %v2114 = vpack.c.b16 %v2082, %v2082
          %v2115 = vpack.c.b16 %v2083, %v2083
          %v2116 = vpack.c.b16 %v2084, %v2084
          %v2117 = vpack.c.b16 %v2085, %v2085
          %v2118 = vpack.c.b16 %v2086, %v2086
          %v2119 = vpack.c.b16 %v2087, %v2087
          %v2120 = vpack.c.b16 %v2088, %v2088
          %v2121 = vpack.c.b16 %v2089, %v2089
          %v2122 = vpack.c.b16 %v2090, %v2090
          %v2123 = vpack.c.b16 %v2091, %v2091
          %v2124 = vpack.c.b16 %v2092, %v2092
          %2157 = vst [vmem:[%s418] sm:$0xf] %v2093
          %2158 = vst [vmem:[%s418 + $0x4] sm:$0xf] %v2094
          %2159 = vst [vmem:[%s418 + $0x8] sm:$0xf] %v2095
          %2160 = vst [vmem:[%s418 + $0xc] sm:$0xf] %v2096
          %2161 = vst [vmem:[%s418 + $0x10] sm:$0xf] %v2097
          %2162 = vst [vmem:[%s418 + $0x14] sm:$0xf] %v2098
          %2163 = vst [vmem:[%s418 + $0x18] sm:$0xf] %v2099
          %2164 = vst [vmem:[%s418 + $0x1c] sm:$0xf] %v2100
          %2165 = vst [vmem:[%s418 + $0x20] sm:$0xf] %v2101
          %2166 = vst [vmem:[%s418 + $0x24] sm:$0xf] %v2102
          %2167 = vst [vmem:[%s418 + $0x28] sm:$0xf] %v2103
          %2168 = vst [vmem:[%s418 + $0x2c] sm:$0xf] %v2104
          %2169 = vst [vmem:[%s418 + $0x30] sm:$0xf] %v2105
          %2170 = vst [vmem:[%s418 + $0x34] sm:$0xf] %v2106
          %2171 = vst [vmem:[%s418 + $0x38] sm:$0xf] %v2107
          %2172 = vst [vmem:[%s418 + $0x3c] sm:$0xf] %v2108
          %2173 = vst [vmem:[%s418 + $0x40] sm:$0xf] %v2109
          %2174 = vst [vmem:[%s418 + $0x44] sm:$0xf] %v2110
          %2175 = vst [vmem:[%s418 + $0x48] sm:$0xf] %v2111
          %2176 = vst [vmem:[%s418 + $0x4c] sm:$0xf] %v2112
          %2177 = vst [vmem:[%s418 + $0x50] sm:$0xf] %v2113
          %2178 = vst [vmem:[%s418 + $0x54] sm:$0xf] %v2114
          %2179 = vst [vmem:[%s418 + $0x58] sm:$0xf] %v2115
          %2180 = vst [vmem:[%s418 + $0x5c] sm:$0xf] %v2116
          %2181 = vst [vmem:[%s418 + $0x60] sm:$0xf] %v2117
          %2182 = vst [vmem:[%s418 + $0x64] sm:$0xf] %v2118
          %2183 = vst [vmem:[%s418 + $0x68] sm:$0xf] %v2119
          %2184 = vst [vmem:[%s418 + $0x6c] sm:$0xf] %v2120
          %2185 = vst [vmem:[%s418 + $0x70] sm:$0xf] %v2121
          %2186 = vst [vmem:[%s418 + $0x74] sm:$0xf] %v2122
          %2187 = vst [vmem:[%s418 + $0x78] sm:$0xf] %v2123
          %2188 = vst [vmem:[%s418 + $0x7c] sm:$0xf] %v2124
        $region87: #{tpu_custom_call.1} parent=58 // pred_fallthru
          _
        %s2189 = sand.u32 %s194, 1
        %s2190 = scalar_lea.sflag [#allocation8], %s2189
        %s2191 = sand.u32 %s194, 1
        %s2192 = smul.addr %s2191, 128
        %s2193 = scalar_lea.vmem [#allocation11], %s2192
        // Predicated region
        $region88: #{tpu_custom_call.1} parent=58 // pred_check
          %p2194 = pneg %p204
        $region89: #{tpu_custom_call.1} parent=58 // pred_check_branch
          %2196 = sbr.rel (%p2194) target = $region91
        $region90: #{tpu_custom_call.1} parent=58 // pred_region
          %s2197 = smul.u32 32, %s31
          %s2199 = ssub.s32 2048, 2048
          %2200 = vsyncadd %s2190, %s2199
          %s2201 = smul.addr %s2197, 64
          %s2202 = scalar_lea.hbm %s5, %s2201
          %s2203 = sshll.u32 %s2193, 4
          %s2204 = int_to_ptr.vmem [resolvable:$true] %s2203
          %2209 = dma.vmem_to_hbm [thread:$0]  %s2204, 2048, %s2202, %s2190, 64, 64, 4
        $region91: #{tpu_custom_call.1} parent=58 // pred_fallthru
          _
      $region59: #{tpu_custom_call.1} parent=5 // pred_fallthru
        _
      %p2210 = scmp.le.s32.totalorder 2, %s20
      // Predicated region
      $region92: #{tpu_custom_call.1} parent=5 // pred_check
        %p2211 = pneg %p2210
      $region93: #{tpu_custom_call.1} parent=5 // pred_check_branch
        %2213 = sbr.rel (%p2211) target = $region95
      $region94: #{tpu_custom_call.1} parent=5 // pred_region
        %s2214 = ssub.s32 %s20, 2
        // Predicated region
        $region96: #{tpu_custom_call.1} parent=94 // pred_check
          %p2215 = pneg %p210
        $region97: #{tpu_custom_call.1} parent=94 // pred_check_branch
          %2217 = sbr.rel (%p2215) target = $region99
        $region98: #{tpu_custom_call.1} parent=94 // pred_region
          %s2218 = sand.u32 %s195, 1
          %s2219 = scalar_lea.sflag [#allocation8], %s2218
          %s2220 = sand.u32 %s195, 1
          %s2221 = smul.addr %s2220, 128
          %s2222 = scalar_lea.vmem [#allocation11], %s2221
          %2223 = dma.done %s2219, 2048
        $region99: #{tpu_custom_call.1} parent=94 // pred_fallthru
          _
      $region95: #{tpu_custom_call.1} parent=5 // pred_fallthru
        _
    $region6: #{tpu_custom_call.1} parent=1 // loop_footer
      %s24 = sadd.s32 1, %s20
    $region7: #{tpu_custom_call.1} parent=1 // loop_footer_branch
      %19 = sbr.rel target = $region3
    $region8: #{tpu_custom_call.1} parent=1 // loop_exit
      _
    %2224 = vsyncpa [#allocation7], 1
    %s2225 = scalar_lea.sflag [#allocation7], 1
    %2226 = vsyncpa %s2225, 1
    %2227 = vsyncpa [#allocation10], 1
    %s2228 = scalar_lea.sflag [#allocation10], 1
    %2229 = vsyncpa %s2228, 1
    %2230 = vsyncpa [#allocation8], 1
    %s2231 = scalar_lea.sflag [#allocation8], 1
    %2232 = vsyncpa %s2231, 1

</llo_original>
